<compile_context>
chip_gen: v7x
topology: tpu7x:2x2x1
jax: 0.10.0
libtpu: 0.0.40
codegen_flags: <defaults>
</compile_context>

<pallas_src>
import functools

import jax
import jax.numpy as jnp
from jax.experimental import pallas as pl
from jax.experimental.pallas import tpu as pltpu

EPS = 1e-5  # nn.InstanceNorm2d default eps, affine=False, biased variance


def _pick_row_pack(H, WC, target_lanes):
    """Smallest row-pack P (P divides H) with lane width P*WC a multiple of 128 and
    >= target_lanes; falls back to any 128-multiple, then P=1 (still legal because
    the block lane dim always equals the full array lane dim)."""
    divisors = [p for p in range(1, H + 1) if H % p == 0]
    for p in divisors:
        if (p * WC) % 128 == 0 and p * WC >= target_lanes and p * WC <= 1024:
            return p
    for p in divisors:
        if (p * WC) % 128 == 0 and p * WC <= 1024:
            return p
    return 1


def _band_weights(w_oihw, W, P):
    """Fold the 3 horizontal taps (with horizontal zero padding) AND the row-pack
    structure of a 3x3 / pad=1 conv into 3 banded (P*W*Cin, P*W*Cout) matrices,
    one per vertical M-row tap i in {0,1,2} (input M-row = output M-row + i - 1):

        out[m, lo] += sum_li  X[m + i - 1, li] * B[i, li, lo]

    in the packed layout lane = q*W*C + x*C + c (q = image row within the pack).
    """
    Cout, Cin, KH, KW = w_oihw.shape
    assert (KH, KW) == (3, 3)
    Li, Lo = P * W * Cin, P * W * Cout

    li = jnp.arange(Li)
    lo = jnp.arange(Lo)
    q_i, x_i, c_i = li // (W * Cin), (li % (W * Cin)) // Cin, li % Cin
    q_o, x_o, c_o = lo // (W * Cout), (lo % (W * Cout)) // Cout, lo % Cout

    tap = jnp.arange(3)
    kh = (tap[:, None, None] - 1) * P + q_i[None, :, None] - q_o[None, None, :] + 1
    kw = x_i[None, :, None] - x_o[None, None, :] + 1
    valid = (kh >= 0) & (kh <= 2) & (kw >= 0) & (kw <= 2)

    w_khwio = jnp.transpose(w_oihw, (2, 3, 1, 0))                 # (kh, kw, ci, co)
    B = w_khwio[jnp.clip(kh, 0, 2), jnp.clip(kw, 0, 2),
                c_i[None, :, None], c_o[None, None, :]]           # (3, Li, Lo)
    return jnp.where(valid, B, 0.0)


def _resblock_kernel(x_ref, b1_ref, b2_ref, g1_ref, sc_ref, srow_ref, rsel_ref,
                     o_ref, *, Hm, bn, compute_dtype):
    # x_ref   : (M, L) lane-dense input slab, M = bn*Hm, L = P*W*C
    # b*_ref  : (3, L, L) banded conv weights (compute_dtype)
    # g1_ref  : (L, C)   channel gather with 1/(H*W) folded in (f32)
    # sc_ref  : (C, L)   channel scatter (f32)
    # srow_ref: (bn, M)  per-sample row-sum selector (f32)       (unused when bn==1)
    # rsel_ref: (M, bn)  per-sample row-broadcast selector (f32) (unused when bn==1)
    # o_ref   : (M, L)
    M, L = x_ref.shape
    x = x_ref[...]                               # f32, reused for the residual add
    x_c = x.astype(compute_dtype)                # cast ONCE for all conv1 taps

    # Per-sample vertical-boundary masks: which rows may receive the m-1 / m+1 tap.
    row = jax.lax.broadcasted_iota(jnp.int32, (M, L), 0)
    pos = row % Hm
    top_ok = pos != 0
    bot_ok = pos != (Hm - 1)

    g1 = g1_ref[...]
    sc = sc_ref[...]

    def conv3x3(lhs_c, w_ref):
        # 3 banded MXU matmuls over the whole slab; vertical taps become sublane
        # rolls (XLU) masked at sample boundaries -- no padded VMEM scratch.
        d0 = jnp.dot(lhs_c, w_ref[0], preferred_element_type=jnp.float32)
        d1 = jnp.dot(lhs_c, w_ref[1], preferred_element_type=jnp.float32)
        d2 = jnp.dot(lhs_c, w_ref[2], preferred_element_type=jnp.float32)
        up = jnp.where(top_ok, pltpu.roll(d0, shift=1, axis=0), 0.0)      # d0[m-1]
        dn = jnp.where(bot_ok, pltpu.roll(d2, shift=M - 1, axis=0), 0.0)  # d2[m+1]
        return d1 + up + dn

    def instance_norm(a):
        # One-pass stats (documented tradeoff), everything f32.
        if bn == 1:
            r1 = jnp.sum(a, axis=0, keepdims=True)                         # (1, L)
            r2 = jnp.sum(a * a, axis=0, keepdims=True)
        else:
            r1 = jnp.dot(srow_ref[...], a, preferred_element_type=jnp.float32)      # (bn, L)
            r2 = jnp.dot(srow_ref[...], a * a, preferred_element_type=jnp.float32)
        s1 = jnp.dot(r1, g1, preferred_element_type=jnp.float32)           # (bn, C) mean
        s2 = jnp.dot(r2, g1, preferred_element_type=jnp.float32)           # (bn, C) E[x^2]
        var = jnp.maximum(s2 - s1 * s1, 0.0)
        rstd = jax.lax.rsqrt(var + EPS)
        mrstd = s1 * rstd
        rstd_l = jnp.dot(rstd, sc, preferred_element_type=jnp.float32)     # (bn, L)
        mrstd_l = jnp.dot(mrstd, sc, preferred_element_type=jnp.float32)
        if bn == 1:
            return a * rstd_l - mrstd_l                                    # (1,L) bcast
        rstd_f = jnp.dot(rsel_ref[...], rstd_l, preferred_element_type=jnp.float32)
        mrstd_f = jnp.dot(rsel_ref[...], mrstd_l, preferred_element_type=jnp.float32)
        return a * rstd_f - mrstd_f

    # conv1 -> IN -> ReLU (intermediate stays in registers)
    h = jnp.maximum(instance_norm(conv3x3(x_c, b1_ref)), 0.0)
    # conv2 -> IN -> +identity -> ReLU
    out = instance_norm(conv3x3(h.astype(compute_dtype), b2_ref))
    o_ref[...] = jnp.maximum(out + x, 0.0).astype(o_ref.dtype)


def resblock_pallas(x_nchw, w1_oihw, w2_oihw, *, block_n=None,
                    compute_dtype=jnp.bfloat16, target_lanes=128):
    """ResBlock forward.  x_nchw: (N, C, H, W); w*_oihw: (C, C, 3, 3), bias=False."""
    N, C, H, W = x_nchw.shape
    assert w1_oihw.shape == (C, C, 3, 3) and w2_oihw.shape == (C, C, 3, 3), \
        "identity residual path needs in_channels == out_channels"
    # TODO(synk): downsample branch (in_channels != out_channels) not implemented.
    WC = W * C

    if block_n is None:
        # Keep >=2 "parallel" grid steps when possible (v7x has 2 TensorCores).
        # Single-TC v5e/v6e callers should pass block_n=N (grid of 1, full M-stack).
        block_n = max(1, N // 2)
        if N % block_n:
            block_n = 1
    assert N % block_n == 0
    nsteps = N // block_n

    P = _pick_row_pack(H, WC, target_lanes)
    Hm = H // P
    L = P * WC
    M = block_n * Hm
    if nsteps > 1 and M % 8:
        # Block sublane dim must be a multiple of 8 unless it spans the whole array.
        block_n, nsteps, M = N, 1, N * Hm

    # NCHW -> lane-dense rows: lane = (row-in-pack)*W*C + x*C + c; consecutive
    # samples are stacked along M so each grid step sees an (M, L) slab.
    x_rows = jnp.transpose(x_nchw, (0, 2, 3, 1)).reshape(nsteps * M, L)

    # Banded weights: built / reshaped / cast ONCE in the wrapper.
    b1 = _band_weights(w1_oihw, W, P).astype(compute_dtype)
    b2 = _band_weights(w2_oihw, W, P).astype(compute_dtype)

    # InstanceNorm constants, hoisted out of the kernel (all f32).
    lane = jnp.arange(L)
    chan = jnp.arange(C)
    g1 = ((lane[:, None] % C) == chan[None, :]).astype(jnp.float32) / float(H * W)
    sc = (chan[:, None] == (lane[None, :] % C)).astype(jnp.float32)
    rowm = jnp.arange(M)
    srow = ((rowm[None, :] // Hm) == jnp.arange(block_n)[:, None]).astype(jnp.float32)
    rsel = jnp.transpose(srow)

    kernel = functools.partial(_resblock_kernel, Hm=Hm, bn=block_n,
                               compute_dtype=compute_dtype)

    cbytes = jnp.dtype(compute_dtype).itemsize
    xbytes = jnp.dtype(x_nchw.dtype).itemsize
    vmem_bytes = (2 * (M * L * xbytes) * 2            # x + out blocks, double-buffered
                  + 2 * (3 * L * L * cbytes) * 2      # banded weights (2 convs, 2 bufs)
                  + (L * C + C * L + 2 * block_n * M) * 4 * 2
                  + 6 * M * L * 4)                    # headroom for live f32 values
    vmem_limit = int(min(64 * 1024 * 1024, max(16 * 1024 * 1024, 2 * vmem_bytes)))

    out_rows = pl.pallas_call(
        kernel,
        out_shape=jax.ShapeDtypeStruct((nsteps * M, L), x_nchw.dtype),
        grid_spec=pltpu.PrefetchScalarGridSpec(
            num_scalar_prefetch=0,
            grid=(nsteps,),
            in_specs=[
                pl.BlockSpec((M, L), lambda n: (n, 0)),
                pl.BlockSpec((3, L, L), lambda n: (0, 0, 0)),
                pl.BlockSpec((3, L, L), lambda n: (0, 0, 0)),
                pl.BlockSpec((L, C), lambda n: (0, 0)),
                pl.BlockSpec((C, L), lambda n: (0, 0)),
                pl.BlockSpec((block_n, M), lambda n: (0, 0)),
                pl.BlockSpec((M, block_n), lambda n: (0, 0)),
            ],
            out_specs=pl.BlockSpec((M, L), lambda n: (n, 0)),
        ),
        compiler_params=pltpu.CompilerParams(
            dimension_semantics=("parallel",),
            vmem_limit_bytes=vmem_limit,
        ),
    )(x_rows, b1, b2, g1, sc, srow, rsel)

    return jnp.transpose(out_rows.reshape(N, H, W, C), (0, 3, 1, 2))


def _reference(x_nchw, w1, w2):
    """Pure-JAX reference mirroring the PyTorch ResBlock forward."""
    def conv3x3(x, w):
        return jax.lax.conv_general_dilated(
            x, w, window_strides=(1, 1), padding=((1, 1), (1, 1)),
            dimension_numbers=("NCHW", "OIHW", "NCHW"))

    def inorm(x):
        mean = jnp.mean(x, axis=(2, 3), keepdims=True)
        var = jnp.mean((x - mean) ** 2, axis=(2, 3), keepdims=True)
        return (x - mean) * jax.lax.rsqrt(var + EPS)

    identity = x_nchw
    out = jax.nn.relu(inorm(conv3x3(x_nchw, w1)))
    out = inorm(conv3x3(out, w2))
    return jax.nn.relu(out + identity)


if __name__ == "__main__":
    key = jax.random.PRNGKey(0)
    kx, k1, k2 = jax.random.split(key, 3)

    N, C, H, W = 2, 4, 16, 16
    x = jax.random.normal(kx, (N, C, H, W), dtype=jnp.float32)
    # Deterministic synthetic conv weights (PyTorch OIHW layout), bias=False.
    w1 = jax.random.normal(k1, (C, C, 3, 3), dtype=jnp.float32) * 0.1
    w2 = jax.random.normal(k2, (C, C, 3, 3), dtype=jnp.float32) * 0.1

    ref = jax.block_until_ready(_reference(x, w1, w2))

    # f32 MXU operands, default grid (block_n=1 -> 2 parallel steps, v7x-friendly,
    # 128-wide lanes via row packing).
    out = jax.block_until_ready(resblock_pallas(x, w1, w2, compute_dtype=jnp.float32))
    assert out.shape == (N, C, H, W)
    assert jnp.allclose(out, ref, atol=1e-3, rtol=1e-3), \
        float(jnp.max(jnp.abs(out - ref)))

    # f32, all samples stacked along M in a single grid step (single-TC v5e/v6e config).
    out_b = jax.block_until_ready(
        resblock_pallas(x, w1, w2, block_n=N, compute_dtype=jnp.float32))
    assert jnp.allclose(out_b, ref, atol=1e-3, rtol=1e-3), \
        float(jnp.max(jnp.abs(out_b - ref)))

    # 256-wide lanes (v6e/v7x MXU-width config), f32.
    out_w = jax.block_until_ready(
        resblock_pallas(x, w1, w2, block_n=N, compute_dtype=jnp.float32,
                        target_lanes=256))
    assert jnp.allclose(out_w, ref, atol=1e-3, rtol=1e-3), \
        float(jnp.max(jnp.abs(out_w - ref)))

    # Default config: bf16 MXU operands with f32 accumulation / norms / residual.
    out_bf = jax.block_until_ready(resblock_pallas(x, w1, w2))
    assert jnp.allclose(out_bf, ref, atol=1e-1, rtol=1e-1), \
        float(jnp.max(jnp.abs(out_bf - ref)))

    print("KERNEL_OK")
</pallas_src>

<mosaic_0001>
module attributes {stable_mosaic.version = 11 : i64} {
  func.func @_resblock_kernel(%arg0: i32, %arg1: memref<8x128xf32, #tpu.memory_space<vmem>>, %arg2: memref<3x128x128xf32, #tpu.memory_space<vmem>>, %arg3: memref<3x128x128xf32, #tpu.memory_space<vmem>>, %arg4: memref<128x4xf32, #tpu.memory_space<vmem>>, %arg5: memref<4x128xf32, #tpu.memory_space<vmem>>, %arg6: memref<1x8xf32, #tpu.memory_space<vmem>>, %arg7: memref<8x1xf32, #tpu.memory_space<vmem>>, %arg8: memref<8x128xf32, #tpu.memory_space<vmem>>) attributes {dimension_semantics = [#tpu.dimension_semantics<parallel>], iteration_bounds = array<i64: 2>, scalar_prefetch = 0 : i64, scratch_operands = 0 : i64, tpu.core_type = #tpu.core_type<tc>, window_params = [{transform_indices = @transform_0, window_bounds = array<i64: 8, 128>}, {pipeline_mode = #tpu.pipeline_mode<synchronous>, transform_indices = @transform_1, window_bounds = array<i64: 3, 128, 128>}, {pipeline_mode = #tpu.pipeline_mode<synchronous>, transform_indices = @transform_2, window_bounds = array<i64: 3, 128, 128>}, {pipeline_mode = #tpu.pipeline_mode<synchronous>, transform_indices = @transform_3, window_bounds = array<i64: 128, 4>}, {pipeline_mode = #tpu.pipeline_mode<synchronous>, transform_indices = @transform_4, window_bounds = array<i64: 4, 128>}, {pipeline_mode = #tpu.pipeline_mode<synchronous>, transform_indices = @transform_5, window_bounds = array<i64: 1, 8>}, {pipeline_mode = #tpu.pipeline_mode<synchronous>, transform_indices = @transform_6, window_bounds = array<i64: 8, 1>}, {transform_indices = @transform_7, window_bounds = array<i64: 8, 128>}]} {
    %c0 = arith.constant 0 : index
    %c0_0 = arith.constant 0 : index
    %0 = vector.load %arg1[%c0, %c0_0] : memref<8x128xf32, #tpu.memory_space<vmem>>, vector<8x128xf32>
    %1 = tpu.iota {dimensions = array<i32: 0>} : vector<8x128xi32>
    %c8_i32 = arith.constant 8 : i32
    %c0_i32 = arith.constant 0 : i32
    %2 = arith.cmpi eq, %c8_i32, %c0_i32 : i32
    %c1_i32 = arith.constant 1 : i32
    %3 = arith.select %2, %c1_i32, %c8_i32 : i32
    %4 = vector.broadcast %3 : i32 to vector<8x128xi32>
    %5 = arith.remsi %1, %4 : vector<8x128xi32>
    %c0_i32_1 = arith.constant 0 : i32
    %6 = vector.broadcast %c0_i32_1 : i32 to vector<8x128xi32>
    %7 = arith.cmpi ne, %5, %6 : vector<8x128xi32>
    %c0_i32_2 = arith.constant 0 : i32
    %8 = vector.broadcast %c0_i32_2 : i32 to vector<8x128xi32>
    %9 = arith.cmpi slt, %5, %8 : vector<8x128xi32>
    %c0_i32_3 = arith.constant 0 : i32
    %10 = arith.cmpi slt, %3, %c0_i32_3 : i32
    %11 = vector.broadcast %10 : i1 to vector<8x128xi1>
    %12 = vector.broadcast %11 : vector<8x128xi1> to vector<8x128xi1>
    %13 = arith.xori %9, %12 : vector<8x128xi1>
    %14 = arith.andi %13, %7 : vector<8x128xi1>
    %15 = vector.broadcast %3 : i32 to vector<8x128xi32>
    %16 = arith.addi %5, %15 : vector<8x128xi32>
    %17 = arith.select %14, %16, %5 : vector<8x128xi1>, vector<8x128xi32>
    %c0_i32_4 = arith.constant 0 : i32
    %18 = vector.broadcast %c0_i32_4 : i32 to vector<8x128xi32>
    %19 = arith.cmpi ne, %17, %18 : vector<8x128xi32>
    %c7_i32 = arith.constant 7 : i32
    %20 = vector.broadcast %c7_i32 : i32 to vector<8x128xi32>
    %21 = arith.cmpi ne, %17, %20 : vector<8x128xi32>
    %c0_5 = arith.constant 0 : index
    %c0_6 = arith.constant 0 : index
    %22 = vector.load %arg4[%c0_5, %c0_6] : memref<128x4xf32, #tpu.memory_space<vmem>>, vector<128x4xf32>
    %c0_7 = arith.constant 0 : index
    %c0_8 = arith.constant 0 : index
    %23 = vector.load %arg5[%c0_7, %c0_8] : memref<4x128xf32, #tpu.memory_space<vmem>>, vector<4x128xf32>
    %c0_9 = arith.constant 0 : index
    %c0_10 = arith.constant 0 : index
    %c0_11 = arith.constant 0 : index
    %24 = vector.load %arg2[%c0_9, %c0_10, %c0_11] : memref<3x128x128xf32, #tpu.memory_space<vmem>>, vector<1x128x128xf32>
    %25 = vector.shape_cast %24 : vector<1x128x128xf32> to vector<128x128xf32>
    %cst = arith.constant dense<0.000000e+00> : vector<8x128xf32>
    %26 = tpu.matmul %0, %25, %cst {dimension_numbers = #tpu.dot_dimension_numbers<[1], [0], [0], [1], [0, 0, 1, 1], [], []>} : vector<8x128xf32>, vector<128x128xf32>, vector<8x128xf32> -> vector<8x128xf32>
    %c1 = arith.constant 1 : index
    %c0_12 = arith.constant 0 : index
    %c0_13 = arith.constant 0 : index
    %27 = vector.load %arg2[%c1, %c0_12, %c0_13] : memref<3x128x128xf32, #tpu.memory_space<vmem>>, vector<1x128x128xf32>
    %28 = vector.shape_cast %27 : vector<1x128x128xf32> to vector<128x128xf32>
    %cst_14 = arith.constant dense<0.000000e+00> : vector<8x128xf32>
    %29 = tpu.matmul %0, %28, %cst_14 {dimension_numbers = #tpu.dot_dimension_numbers<[1], [0], [0], [1], [0, 0, 1, 1], [], []>} : vector<8x128xf32>, vector<128x128xf32>, vector<8x128xf32> -> vector<8x128xf32>
    %c2 = arith.constant 2 : index
    %c0_15 = arith.constant 0 : index
    %c0_16 = arith.constant 0 : index
    %30 = vector.load %arg2[%c2, %c0_15, %c0_16] : memref<3x128x128xf32, #tpu.memory_space<vmem>>, vector<1x128x128xf32>
    %31 = vector.shape_cast %30 : vector<1x128x128xf32> to vector<128x128xf32>
    %cst_17 = arith.constant dense<0.000000e+00> : vector<8x128xf32>
    %32 = tpu.matmul %0, %31, %cst_17 {dimension_numbers = #tpu.dot_dimension_numbers<[1], [0], [0], [1], [0, 0, 1, 1], [], []>} : vector<8x128xf32>, vector<128x128xf32>, vector<8x128xf32> -> vector<8x128xf32>
    %c1_i32_18 = arith.constant 1 : i32
    %33 = tpu.dynamic_rotate %26 by %c1_i32_18 dim 0 : vector<8x128xf32>, i32 -> vector<8x128xf32>
    %cst_19 = arith.constant 0.000000e+00 : f32
    %34 = vector.broadcast %cst_19 : f32 to vector<8x128xf32>
    %35 = arith.select %19, %33, %34 : vector<8x128xi1>, vector<8x128xf32>
    %c7_i32_20 = arith.constant 7 : i32
    %36 = tpu.dynamic_rotate %32 by %c7_i32_20 dim 0 : vector<8x128xf32>, i32 -> vector<8x128xf32>
    %cst_21 = arith.constant 0.000000e+00 : f32
    %37 = vector.broadcast %cst_21 : f32 to vector<8x128xf32>
    %38 = arith.select %21, %36, %37 : vector<8x128xi1>, vector<8x128xf32>
    %39 = arith.addf %29, %35 : vector<8x128xf32>
    %40 = arith.addf %39, %38 : vector<8x128xf32>
    %cst_22 = arith.constant dense<0.000000e+00> : vector<128xf32>
    %41 = vector.multi_reduction <add>, %40, %cst_22 [0] : vector<8x128xf32> to vector<128xf32>
    %42 = vector.shape_cast %41 : vector<128xf32> to vector<1x128xf32>
    %43 = arith.mulf %40, %40 : vector<8x128xf32>
    %cst_23 = arith.constant dense<0.000000e+00> : vector<128xf32>
    %44 = vector.multi_reduction <add>, %43, %cst_23 [0] : vector<8x128xf32> to vector<128xf32>
    %45 = vector.shape_cast %44 : vector<128xf32> to vector<1x128xf32>
    %cst_24 = arith.constant dense<0.000000e+00> : vector<1x4xf32>
    %46 = tpu.matmul %42, %22, %cst_24 {dimension_numbers = #tpu.dot_dimension_numbers<[1], [0], [0], [1], [0, 0, 1, 1], [], []>} : vector<1x128xf32>, vector<128x4xf32>, vector<1x4xf32> -> vector<1x4xf32>
    %cst_25 = arith.constant dense<0.000000e+00> : vector<1x4xf32>
    %47 = tpu.matmul %45, %22, %cst_25 {dimension_numbers = #tpu.dot_dimension_numbers<[1], [0], [0], [1], [0, 0, 1, 1], [], []>} : vector<1x128xf32>, vector<128x4xf32>, vector<1x4xf32> -> vector<1x4xf32>
    %48 = arith.mulf %46, %46 : vector<1x4xf32>
    %49 = arith.subf %47, %48 : vector<1x4xf32>
    %cst_26 = arith.constant 0.000000e+00 : f32
    %50 = vector.broadcast %cst_26 : f32 to vector<1x4xf32>
    %51 = arith.maximumf %49, %50 : vector<1x4xf32>
    %cst_27 = arith.constant 9.99999974E-6 : f32
    %52 = vector.broadcast %cst_27 : f32 to vector<1x4xf32>
    %53 = arith.addf %51, %52 : vector<1x4xf32>
    %54 = math.rsqrt %53 : vector<1x4xf32>
    %55 = arith.mulf %46, %54 : vector<1x4xf32>
    %cst_28 = arith.constant dense<0.000000e+00> : vector<1x128xf32>
    %56 = tpu.matmul %54, %23, %cst_28 {dimension_numbers = #tpu.dot_dimension_numbers<[1], [0], [0], [1], [0, 0, 1, 1], [], []>} : vector<1x4xf32>, vector<4x128xf32>, vector<1x128xf32> -> vector<1x128xf32>
    %cst_29 = arith.constant dense<0.000000e+00> : vector<1x128xf32>
    %57 = tpu.matmul %55, %23, %cst_29 {dimension_numbers = #tpu.dot_dimension_numbers<[1], [0], [0], [1], [0, 0, 1, 1], [], []>} : vector<1x4xf32>, vector<4x128xf32>, vector<1x128xf32> -> vector<1x128xf32>
    %58 = vector.broadcast %56 : vector<1x128xf32> to vector<8x128xf32>
    %59 = arith.mulf %40, %58 : vector<8x128xf32>
    %60 = vector.broadcast %57 : vector<1x128xf32> to vector<8x128xf32>
    %61 = arith.subf %59, %60 : vector<8x128xf32>
    %cst_30 = arith.constant 0.000000e+00 : f32
    %62 = vector.broadcast %cst_30 : f32 to vector<8x128xf32>
    %63 = arith.maximumf %61, %62 : vector<8x128xf32>
    %c0_31 = arith.constant 0 : index
    %c0_32 = arith.constant 0 : index
    %c0_33 = arith.constant 0 : index
    %64 = vector.load %arg3[%c0_31, %c0_32, %c0_33] : memref<3x128x128xf32, #tpu.memory_space<vmem>>, vector<1x128x128xf32>
    %65 = vector.shape_cast %64 : vector<1x128x128xf32> to vector<128x128xf32>
    %cst_34 = arith.constant dense<0.000000e+00> : vector<8x128xf32>
    %66 = tpu.matmul %63, %65, %cst_34 {dimension_numbers = #tpu.dot_dimension_numbers<[1], [0], [0], [1], [0, 0, 1, 1], [], []>} : vector<8x128xf32>, vector<128x128xf32>, vector<8x128xf32> -> vector<8x128xf32>
    %c1_35 = arith.constant 1 : index
    %c0_36 = arith.constant 0 : index
    %c0_37 = arith.constant 0 : index
    %67 = vector.load %arg3[%c1_35, %c0_36, %c0_37] : memref<3x128x128xf32, #tpu.memory_space<vmem>>, vector<1x128x128xf32>
    %68 = vector.shape_cast %67 : vector<1x128x128xf32> to vector<128x128xf32>
    %cst_38 = arith.constant dense<0.000000e+00> : vector<8x128xf32>
    %69 = tpu.matmul %63, %68, %cst_38 {dimension_numbers = #tpu.dot_dimension_numbers<[1], [0], [0], [1], [0, 0, 1, 1], [], []>} : vector<8x128xf32>, vector<128x128xf32>, vector<8x128xf32> -> vector<8x128xf32>
    %c2_39 = arith.constant 2 : index
    %c0_40 = arith.constant 0 : index
    %c0_41 = arith.constant 0 : index
    %70 = vector.load %arg3[%c2_39, %c0_40, %c0_41] : memref<3x128x128xf32, #tpu.memory_space<vmem>>, vector<1x128x128xf32>
    %71 = vector.shape_cast %70 : vector<1x128x128xf32> to vector<128x128xf32>
    %cst_42 = arith.constant dense<0.000000e+00> : vector<8x128xf32>
    %72 = tpu.matmul %63, %71, %cst_42 {dimension_numbers = #tpu.dot_dimension_numbers<[1], [0], [0], [1], [0, 0, 1, 1], [], []>} : vector<8x128xf32>, vector<128x128xf32>, vector<8x128xf32> -> vector<8x128xf32>
    %c1_i32_43 = arith.constant 1 : i32
    %73 = tpu.dynamic_rotate %66 by %c1_i32_43 dim 0 : vector<8x128xf32>, i32 -> vector<8x128xf32>
    %cst_44 = arith.constant 0.000000e+00 : f32
    %74 = vector.broadcast %cst_44 : f32 to vector<8x128xf32>
    %75 = arith.select %19, %73, %74 : vector<8x128xi1>, vector<8x128xf32>
    %c7_i32_45 = arith.constant 7 : i32
    %76 = tpu.dynamic_rotate %72 by %c7_i32_45 dim 0 : vector<8x128xf32>, i32 -> vector<8x128xf32>
    %cst_46 = arith.constant 0.000000e+00 : f32
    %77 = vector.broadcast %cst_46 : f32 to vector<8x128xf32>
    %78 = arith.select %21, %76, %77 : vector<8x128xi1>, vector<8x128xf32>
    %79 = arith.addf %69, %75 : vector<8x128xf32>
    %80 = arith.addf %79, %78 : vector<8x128xf32>
    %cst_47 = arith.constant dense<0.000000e+00> : vector<128xf32>
    %81 = vector.multi_reduction <add>, %80, %cst_47 [0] : vector<8x128xf32> to vector<128xf32>
    %82 = vector.shape_cast %81 : vector<128xf32> to vector<1x128xf32>
    %83 = arith.mulf %80, %80 : vector<8x128xf32>
    %cst_48 = arith.constant dense<0.000000e+00> : vector<128xf32>
    %84 = vector.multi_reduction <add>, %83, %cst_48 [0] : vector<8x128xf32> to vector<128xf32>
    %85 = vector.shape_cast %84 : vector<128xf32> to vector<1x128xf32>
    %cst_49 = arith.constant dense<0.000000e+00> : vector<1x4xf32>
    %86 = tpu.matmul %82, %22, %cst_49 {dimension_numbers = #tpu.dot_dimension_numbers<[1], [0], [0], [1], [0, 0, 1, 1], [], []>} : vector<1x128xf32>, vector<128x4xf32>, vector<1x4xf32> -> vector<1x4xf32>
    %cst_50 = arith.constant dense<0.000000e+00> : vector<1x4xf32>
    %87 = tpu.matmul %85, %22, %cst_50 {dimension_numbers = #tpu.dot_dimension_numbers<[1], [0], [0], [1], [0, 0, 1, 1], [], []>} : vector<1x128xf32>, vector<128x4xf32>, vector<1x4xf32> -> vector<1x4xf32>
    %88 = arith.mulf %86, %86 : vector<1x4xf32>
    %89 = arith.subf %87, %88 : vector<1x4xf32>
    %cst_51 = arith.constant 0.000000e+00 : f32
    %90 = vector.broadcast %cst_51 : f32 to vector<1x4xf32>
    %91 = arith.maximumf %89, %90 : vector<1x4xf32>
    %cst_52 = arith.constant 9.99999974E-6 : f32
    %92 = vector.broadcast %cst_52 : f32 to vector<1x4xf32>
    %93 = arith.addf %91, %92 : vector<1x4xf32>
    %94 = math.rsqrt %93 : vector<1x4xf32>
    %95 = arith.mulf %86, %94 : vector<1x4xf32>
    %cst_53 = arith.constant dense<0.000000e+00> : vector<1x128xf32>
    %96 = tpu.matmul %94, %23, %cst_53 {dimension_numbers = #tpu.dot_dimension_numbers<[1], [0], [0], [1], [0, 0, 1, 1], [], []>} : vector<1x4xf32>, vector<4x128xf32>, vector<1x128xf32> -> vector<1x128xf32>
    %cst_54 = arith.constant dense<0.000000e+00> : vector<1x128xf32>
    %97 = tpu.matmul %95, %23, %cst_54 {dimension_numbers = #tpu.dot_dimension_numbers<[1], [0], [0], [1], [0, 0, 1, 1], [], []>} : vector<1x4xf32>, vector<4x128xf32>, vector<1x128xf32> -> vector<1x128xf32>
    %98 = vector.broadcast %96 : vector<1x128xf32> to vector<8x128xf32>
    %99 = arith.mulf %80, %98 : vector<8x128xf32>
    %100 = vector.broadcast %97 : vector<1x128xf32> to vector<8x128xf32>
    %101 = arith.subf %99, %100 : vector<8x128xf32>
    %102 = arith.addf %101, %0 : vector<8x128xf32>
    %cst_55 = arith.constant 0.000000e+00 : f32
    %103 = vector.broadcast %cst_55 : f32 to vector<8x128xf32>
    %104 = arith.maximumf %102, %103 : vector<8x128xf32>
    %c0_56 = arith.constant 0 : index
    %c0_57 = arith.constant 0 : index
    %105 = vector.load %arg8[%c0_56, %c0_57] : memref<8x128xf32, #tpu.memory_space<vmem>>, vector<8x128xf32>
    tpu.vector_store %arg8[%c0_56, %c0_57], %104 {strides = array<i32>} : memref<8x128xf32, #tpu.memory_space<vmem>>, vector<8x128xf32>,
    return
  }
  func.func @transform_0(%arg0: i32) -> (i32, i32) {
    %c0_i32 = arith.constant 0 : i32
    %c0_i32_0 = arith.constant 0 : i32
    return %arg0, %c0_i32 : i32, i32
  }
  func.func @transform_1(%arg0: i32) -> (i32, i32, i32) {
    %c0_i32 = arith.constant 0 : i32
    %c0_i32_0 = arith.constant 0 : i32
    %c0_i32_1 = arith.constant 0 : i32
    %c0_i32_2 = arith.constant 0 : i32
    return %c0_i32, %c0_i32_0, %c0_i32_1 : i32, i32, i32
  }
  func.func @transform_2(%arg0: i32) -> (i32, i32, i32) {
    %c0_i32 = arith.constant 0 : i32
    %c0_i32_0 = arith.constant 0 : i32
    %c0_i32_1 = arith.constant 0 : i32
    %c0_i32_2 = arith.constant 0 : i32
    return %c0_i32, %c0_i32_0, %c0_i32_1 : i32, i32, i32
  }
  func.func @transform_3(%arg0: i32) -> (i32, i32) {
    %c0_i32 = arith.constant 0 : i32
    %c0_i32_0 = arith.constant 0 : i32
    %c0_i32_1 = arith.constant 0 : i32
    return %c0_i32, %c0_i32_0 : i32, i32
  }
  func.func @transform_4(%arg0: i32) -> (i32, i32) {
    %c0_i32 = arith.constant 0 : i32
    %c0_i32_0 = arith.constant 0 : i32
    %c0_i32_1 = arith.constant 0 : i32
    return %c0_i32, %c0_i32_0 : i32, i32
  }
  func.func @transform_5(%arg0: i32) -> (i32, i32) {
    %c0_i32 = arith.constant 0 : i32
    %c0_i32_0 = arith.constant 0 : i32
    %c0_i32_1 = arith.constant 0 : i32
    return %c0_i32, %c0_i32_0 : i32, i32
  }
  func.func @transform_6(%arg0: i32) -> (i32, i32) {
    %c0_i32 = arith.constant 0 : i32
    %c0_i32_0 = arith.constant 0 : i32
    %c0_i32_1 = arith.constant 0 : i32
    return %c0_i32, %c0_i32_0 : i32, i32
  }
  func.func @transform_7(%arg0: i32) -> (i32, i32) {
    %c0_i32 = arith.constant 0 : i32
    %c0_i32_0 = arith.constant 0 : i32
    return %arg0, %c0_i32 : i32, i32
  }
}

</mosaic_0001>

<llo_original>
// kernel: tpu_custom_call.1
$region0: #{tpu_custom_call.1}
  #allocation0 [shape = 'u32[]', space=smem, size = 0x4, offset = 0x4, fixed_abs, tag = 'smem constant byte address 0x4 - core index']
  #allocation1 [shape = 'u32[144,128]{1,0:T(1,128)}', space=vmem, size = 0x12000, scoped, tag = 'internal scratch']
  %s0 = inlined_call_operand.vmem [shape: f32[16,128], index: 0, kind: input, shape index: {}]
  %s1 = inlined_call_operand.hbm [shape: f32[3,128,128], index: 1, kind: input, shape index: {}]
  %s2 = inlined_call_operand.hbm [shape: f32[3,128,128], index: 2, kind: input, shape index: {}]
  %s3 = inlined_call_operand.vmem [shape: f32[128,4], index: 3, kind: input, shape index: {}]
  %s4 = inlined_call_operand.vmem [shape: f32[4,128], index: 4, kind: input, shape index: {}]
  %s5 = inlined_call_operand.vmem [shape: f32[1,8], index: 5, kind: input, shape index: {}]
  %s6 = inlined_call_operand.vmem [shape: f32[8,1], index: 6, kind: input, shape index: {}]
  %s7 = inlined_call_operand.hbm [shape: f32[16,128], index: 7, kind: output, shape index: {}]
  %s8 = sld [smem:[#allocation0]]
  $region69: #{tpu_custom_call.1} parent=0
    _
  %s10 = ssub.s32 1, %s8
  %s11 = scalar_select 0, %s10, %s8
  $region1: #{tpu_custom_call.1} parent=0
    #allocation2 [shape = 'u8[196608]{0}', space=vmem, size = 0x30000, scoped, tag = 'input window, operand 1, single buffered']
    #allocation3 [shape = 's32[2]{0}', space=sflag, size = 0x8, scoped, tag = 'scoped memory for tpu_custom_call.1']
    #allocation4 [shape = 's32[2]{0}', space=sflag, size = 0x8, scoped, tag = 'scoped memory for tpu_custom_call.1']
    #allocation5 [shape = 'u8[196608]{0}', space=vmem, size = 0x30000, scoped, tag = 'input window, operand 2, single buffered']
    #allocation6 [shape = 's32[1]{0}', space=sflag, size = 0x4, scoped, tag = 'scoped memory for tpu_custom_call.1']
    #allocation7 [shape = 'u8[8192]{0}', space=vmem, size = 0x2000, scoped, tag = 'output window, operand 0']
    %12 = vsyncpa [#allocation3], 0
    %13 = vsyncpa [#allocation6], 0
    %14 = vsyncpa [#allocation4], 0
    %s15 = scalar_lea.sflag [#allocation4], 1
    %16 = vsyncpa %s15, 0
    loop: start=0, step=1, limit=4
    $region2: #{tpu_custom_call.1} parent=1 // loop_pre_header
      _
    $region3: #{tpu_custom_call.1} parent=1 // loop_header
      %s18 = sphi 0, %s22
      %p19 = scmp.ge.s32.totalorder %s18, 4
      %s28 = sphi 0, %s30
      %s31 = sphi 0, %s28
      %s32 = sphi 0, %s31
      %s48 = sphi 0, %s32
      %s52 = sphi 0, %s52
      %s54 = sphi 0, %s52
      %s55 = sphi 0, %s54
      %s69 = sphi 0, %s55
      %s73 = sphi 0, %s73
      %s75 = sphi 0, %s73
      %s76 = sphi 0, %s75
      %s90 = sphi 0, %s76
      %s94 = sphi 0, %s94
      %s96 = sphi 0, %s94
      %s97 = sphi 0, %s96
      %s111 = sphi 0, %s97
      %s115 = sphi 0, %s115
      %s117 = sphi 0, %s115
      %s118 = sphi 0, %s117
      %s132 = sphi 0, %s118
      %s136 = sphi 0, %s136
      %s138 = sphi 0, %s136
      %s139 = sphi 0, %s138
      %s153 = sphi 0, %s139
      %s157 = sphi 0, %s157
      %s159 = sphi 0, %s157
      %s160 = sphi 0, %s159
      %s174 = sphi 0, %s160
      %s180 = sphi 0, %s182
      %s183 = sphi 0, %s180
      %s184 = sphi 0, %s183
      %s200 = sphi 0, %s184
    $region4: #{tpu_custom_call.1} parent=1 // loop_header_branch
      %21 = sbr.rel (%p19) target = $region8
    $region5: #{tpu_custom_call.1} parent=1 // loop_body
      %s23 = ssub.s32 %s18, 1
      %s24 = ssub.s32 %s18, 2
      %s25 = sadd.s32 %s18, 1
      %s26 = ssub.s32 %s18, %s25
      %p27 = scmp.eq.s32.totalorder %s26, 0
      %s29 = sadd.s32 %s28, 1
      %s30 = scalar_select %p27, %s28, %s29
      %p33 = pneg %p27
      %p34 = scmp.eq.s32.totalorder %s18, 1
      %p35 = por %p33, %p34
      %p36 = scmp.ne.s32.totalorder %s28, %s31
      %p37 = scmp.eq.s32.totalorder %s18, 0
      %p38 = por %p36, %p37
      %p39 = scmp.ne.s32.totalorder %s28, %s31
      %p40 = scmp.eq.s32.totalorder %s23, 1
      %p41 = por %p39, %p40
      %p42 = scmp.ne.s32.totalorder %s31, %s32
      %p43 = scmp.eq.s32.totalorder %s23, 0
      %p44 = por %p42, %p43
      %p45 = scmp.ne.s32.totalorder %s31, %s32
      %p46 = scmp.eq.s32.totalorder %s24, 1
      %p47 = por %p45, %p46
      %p49 = scmp.ne.s32.totalorder %s32, %s48
      %p50 = scmp.eq.s32.totalorder %s24, 0
      %p51 = por %p49, %p50
      %s53 = sadd.s32 %s52, 1
      %p56 = scmp.eq.s32.totalorder %s18, 1
      %p57 = scmp.ne.s32.totalorder %s52, %s54
      %p58 = scmp.eq.s32.totalorder %s18, 0
      %p59 = por %p57, %p58
      %p60 = scmp.ne.s32.totalorder %s52, %s54
      %p61 = scmp.eq.s32.totalorder %s23, 1
      %p62 = por %p60, %p61
      %p63 = scmp.ne.s32.totalorder %s54, %s55
      %p64 = scmp.eq.s32.totalorder %s23, 0
      %p65 = por %p63, %p64
      %p66 = scmp.ne.s32.totalorder %s54, %s55
      %p67 = scmp.eq.s32.totalorder %s24, 1
      %p68 = por %p66, %p67
      %p70 = scmp.ne.s32.totalorder %s55, %s69
      %p71 = scmp.eq.s32.totalorder %s24, 0
      %p72 = por %p70, %p71
      %s74 = sadd.s32 %s73, 1
      %p77 = scmp.eq.s32.totalorder %s18, 1
      %p78 = scmp.ne.s32.totalorder %s73, %s75
      %p79 = scmp.eq.s32.totalorder %s18, 0
      %p80 = por %p78, %p79
      %p81 = scmp.ne.s32.totalorder %s73, %s75
      %p82 = scmp.eq.s32.totalorder %s23, 1
      %p83 = por %p81, %p82
      %p84 = scmp.ne.s32.totalorder %s75, %s76
      %p85 = scmp.eq.s32.totalorder %s23, 0
      %p86 = por %p84, %p85
      %p87 = scmp.ne.s32.totalorder %s75, %s76
      %p88 = scmp.eq.s32.totalorder %s24, 1
      %p89 = por %p87, %p88
      %p91 = scmp.ne.s32.totalorder %s76, %s90
      %p92 = scmp.eq.s32.totalorder %s24, 0
      %p93 = por %p91, %p92
      %s95 = sadd.s32 %s94, 1
      %p98 = scmp.eq.s32.totalorder %s18, 1
      %p99 = scmp.ne.s32.totalorder %s94, %s96
      %p100 = scmp.eq.s32.totalorder %s18, 0
      %p101 = por %p99, %p100
      %p102 = scmp.ne.s32.totalorder %s94, %s96
      %p103 = scmp.eq.s32.totalorder %s23, 1
      %p104 = por %p102, %p103
      %p105 = scmp.ne.s32.totalorder %s96, %s97
      %p106 = scmp.eq.s32.totalorder %s23, 0
      %p107 = por %p105, %p106
      %p108 = scmp.ne.s32.totalorder %s96, %s97
      %p109 = scmp.eq.s32.totalorder %s24, 1
      %p110 = por %p108, %p109
      %p112 = scmp.ne.s32.totalorder %s97, %s111
      %p113 = scmp.eq.s32.totalorder %s24, 0
      %p114 = por %p112, %p113
      %s116 = sadd.s32 %s115, 1
      %p119 = scmp.eq.s32.totalorder %s18, 1
      %p120 = scmp.ne.s32.totalorder %s115, %s117
      %p121 = scmp.eq.s32.totalorder %s18, 0
      %p122 = por %p120, %p121
      %p123 = scmp.ne.s32.totalorder %s115, %s117
      %p124 = scmp.eq.s32.totalorder %s23, 1
      %p125 = por %p123, %p124
      %p126 = scmp.ne.s32.totalorder %s117, %s118
      %p127 = scmp.eq.s32.totalorder %s23, 0
      %p128 = por %p126, %p127
      %p129 = scmp.ne.s32.totalorder %s117, %s118
      %p130 = scmp.eq.s32.totalorder %s24, 1
      %p131 = por %p129, %p130
      %p133 = scmp.ne.s32.totalorder %s118, %s132
      %p134 = scmp.eq.s32.totalorder %s24, 0
      %p135 = por %p133, %p134
      %s137 = sadd.s32 %s136, 1
      %p140 = scmp.eq.s32.totalorder %s18, 1
      %p141 = scmp.ne.s32.totalorder %s136, %s138
      %p142 = scmp.eq.s32.totalorder %s18, 0
      %p143 = por %p141, %p142
      %p144 = scmp.ne.s32.totalorder %s136, %s138
      %p145 = scmp.eq.s32.totalorder %s23, 1
      %p146 = por %p144, %p145
      %p147 = scmp.ne.s32.totalorder %s138, %s139
      %p148 = scmp.eq.s32.totalorder %s23, 0
      %p149 = por %p147, %p148
      %p150 = scmp.ne.s32.totalorder %s138, %s139
      %p151 = scmp.eq.s32.totalorder %s24, 1
      %p152 = por %p150, %p151
      %p154 = scmp.ne.s32.totalorder %s139, %s153
      %p155 = scmp.eq.s32.totalorder %s24, 0
      %p156 = por %p154, %p155
      %s158 = sadd.s32 %s157, 1
      %p161 = scmp.eq.s32.totalorder %s18, 1
      %p162 = scmp.ne.s32.totalorder %s157, %s159
      %p163 = scmp.eq.s32.totalorder %s18, 0
      %p164 = por %p162, %p163
      %p165 = scmp.ne.s32.totalorder %s157, %s159
      %p166 = scmp.eq.s32.totalorder %s23, 1
      %p167 = por %p165, %p166
      %p168 = scmp.ne.s32.totalorder %s159, %s160
      %p169 = scmp.eq.s32.totalorder %s23, 0
      %p170 = por %p168, %p169
      %p171 = scmp.ne.s32.totalorder %s159, %s160
      %p172 = scmp.eq.s32.totalorder %s24, 1
      %p173 = por %p171, %p172
      %p175 = scmp.ne.s32.totalorder %s160, %s174
      %p176 = scmp.eq.s32.totalorder %s24, 0
      %p177 = por %p175, %p176
      %s178 = ssub.s32 %s18, %s25
      %p179 = scmp.eq.s32.totalorder %s178, 0
      %s181 = sadd.s32 %s180, 1
      %s182 = scalar_select %p179, %s180, %s181
      %p185 = pneg %p179
      %p186 = scmp.eq.s32.totalorder %s18, 1
      %p187 = por %p185, %p186
      %p188 = scmp.ne.s32.totalorder %s180, %s183
      %p189 = scmp.eq.s32.totalorder %s18, 0
      %p190 = por %p188, %p189
      %p191 = scmp.ne.s32.totalorder %s180, %s183
      %p192 = scmp.eq.s32.totalorder %s23, 1
      %p193 = por %p191, %p192
      %p194 = scmp.ne.s32.totalorder %s183, %s184
      %p195 = scmp.eq.s32.totalorder %s23, 0
      %p196 = por %p194, %p195
      %p197 = scmp.ne.s32.totalorder %s183, %s184
      %p198 = scmp.eq.s32.totalorder %s24, 1
      %p199 = por %p197, %p198
      %p201 = scmp.ne.s32.totalorder %s184, %s200
      %p202 = scmp.eq.s32.totalorder %s24, 0
      %p203 = por %p201, %p202
      %p204 = scmp.le.s32.totalorder 1, %s18
      %p205 = scmp.lt.s32.totalorder %s18, 3
      %p206 = pnand %p204, %p205
      %p207 = pneg %p206
      // Predicated region
      $region9: #{tpu_custom_call.1} parent=5 // pred_check
        _
      $region10: #{tpu_custom_call.1} parent=5 // pred_check_branch
        %209 = sbr.rel (%p206) target = $region12
      $region11: #{tpu_custom_call.1} parent=5 // pred_region
        %s210 = ssub.s32 %s18, 1
        // Predicated region
        $region13: #{tpu_custom_call.1} parent=11 // pred_check
          %p211 = pneg %p65
        $region14: #{tpu_custom_call.1} parent=11 // pred_check_branch
          %213 = sbr.rel (%p211) target = $region16
        $region15: #{tpu_custom_call.1} parent=11 // pred_region
          %s215 = ssub.s32 6144, 6144
          %216 = vsyncadd [#allocation3], %s215
          %s217 = sshll.u32 [#allocation2], 4
          %s218 = int_to_ptr.vmem [resolvable:$true] %s217
          %223 = dma.hbm_to_vmem [thread:$0]  %s1, 6144, %s218, [#allocation3], 128, 128, 8
        $region16: #{tpu_custom_call.1} parent=11 // pred_fallthru
          _
        // Predicated region
        $region17: #{tpu_custom_call.1} parent=11 // pred_check
          %p224 = pneg %p86
        $region18: #{tpu_custom_call.1} parent=11 // pred_check_branch
          %226 = sbr.rel (%p224) target = $region20
        $region19: #{tpu_custom_call.1} parent=11 // pred_region
          %s228 = ssub.s32 6144, 6144
          %229 = vsyncadd [#allocation6], %s228
          %s230 = sshll.u32 [#allocation5], 4
          %s231 = int_to_ptr.vmem [resolvable:$true] %s230
          %236 = dma.hbm_to_vmem [thread:$0]  %s2, 6144, %s231, [#allocation6], 128, 128, 8
        $region20: #{tpu_custom_call.1} parent=11 // pred_fallthru
          _
        // Predicated region
        $region21: #{tpu_custom_call.1} parent=11 // pred_check
          %p237 = pneg %p107
        $region22: #{tpu_custom_call.1} parent=11 // pred_check_branch
          %239 = sbr.rel (%p237) target = $region24
        $region23: #{tpu_custom_call.1} parent=11 // pred_region
          _
        $region24: #{tpu_custom_call.1} parent=11 // pred_fallthru
          _
        // Predicated region
        $region25: #{tpu_custom_call.1} parent=11 // pred_check
          %p240 = pneg %p128
        $region26: #{tpu_custom_call.1} parent=11 // pred_check_branch
          %242 = sbr.rel (%p240) target = $region28
        $region27: #{tpu_custom_call.1} parent=11 // pred_region
          _
        $region28: #{tpu_custom_call.1} parent=11 // pred_fallthru
          _
        // Predicated region
        $region29: #{tpu_custom_call.1} parent=11 // pred_check
          %p243 = pneg %p149
        $region30: #{tpu_custom_call.1} parent=11 // pred_check_branch
          %245 = sbr.rel (%p243) target = $region32
        $region31: #{tpu_custom_call.1} parent=11 // pred_region
          _
        $region32: #{tpu_custom_call.1} parent=11 // pred_fallthru
          _
        // Predicated region
        $region33: #{tpu_custom_call.1} parent=11 // pred_check
          %p246 = pneg %p170
        $region34: #{tpu_custom_call.1} parent=11 // pred_check_branch
          %248 = sbr.rel (%p246) target = $region36
        $region35: #{tpu_custom_call.1} parent=11 // pred_region
          _
        $region36: #{tpu_custom_call.1} parent=11 // pred_fallthru
          _
      $region12: #{tpu_custom_call.1} parent=5 // pred_fallthru
        _
      %p249 = scmp.lt.s32.totalorder %s18, 2
      // Predicated region
      $region37: #{tpu_custom_call.1} parent=5 // pred_check
        %p250 = pneg %p249
      $region38: #{tpu_custom_call.1} parent=5 // pred_check_branch
        %252 = sbr.rel (%p250) target = $region40
      $region39: #{tpu_custom_call.1} parent=5 // pred_region
        // Predicated region
        $region41: #{tpu_custom_call.1} parent=39 // pred_check
          %p253 = pneg %p38
        $region42: #{tpu_custom_call.1} parent=39 // pred_check_branch
          %255 = sbr.rel (%p253) target = $region44
        $region43: #{tpu_custom_call.1} parent=39 // pred_region
          %p256 = scmp.lt.s32.totalorder %s18, 1
          %s257 = scalar_select %p256, %s18, 1
          %s258 = smul.addr %s257, 8
          %s259 = scalar_lea.vmem %s0, %s258
        $region44: #{tpu_custom_call.1} parent=39 // pred_fallthru
          _
      $region40: #{tpu_custom_call.1} parent=5 // pred_fallthru
        _
      %p260 = scmp.le.s32.totalorder 1, %s18
      %p261 = scmp.lt.s32.totalorder %s18, 3
      %p262 = pnand %p260, %p261
      %p263 = pneg %p262
      // Predicated region
      $region45: #{tpu_custom_call.1} parent=5 // pred_check
        _
      $region46: #{tpu_custom_call.1} parent=5 // pred_check_branch
        %265 = sbr.rel (%p262) target = $region48
      $region47: #{tpu_custom_call.1} parent=5 // pred_region
        %s266 = ssub.s32 %s18, 1
        // Predicated region
        $region49: #{tpu_custom_call.1} parent=47 // pred_check
          %p267 = pneg %p65
        $region50: #{tpu_custom_call.1} parent=47 // pred_check_branch
          %269 = sbr.rel (%p267) target = $region52
        $region51: #{tpu_custom_call.1} parent=47 // pred_region
          %270 = dma.done [#allocation3], 6144
        $region52: #{tpu_custom_call.1} parent=47 // pred_fallthru
          _
        // Predicated region
        $region53: #{tpu_custom_call.1} parent=47 // pred_check
          %p271 = pneg %p86
        $region54: #{tpu_custom_call.1} parent=47 // pred_check_branch
          %273 = sbr.rel (%p271) target = $region56
        $region55: #{tpu_custom_call.1} parent=47 // pred_region
          %274 = dma.done [#allocation6], 6144
        $region56: #{tpu_custom_call.1} parent=47 // pred_fallthru
          _
        %p275 = scmp.lt.s32.totalorder %s23, 1
        %s276 = scalar_select %p275, %s23, 1
        %s277 = smul.addr %s276, 8
        %s278 = scalar_lea.vmem %s0, %s277
        %p279 = pneg %p44
        %p280 = pneg %p41
        %p281 = pneg %p65
        %p282 = pneg %p62
        %p283 = pneg %p86
        %p284 = pneg %p83
        %p285 = pneg %p107
        %p286 = pneg %p104
        %p287 = pneg %p128
        %p288 = pneg %p125
        %p289 = pneg %p149
        %p290 = pneg %p146
        %p291 = pneg %p170
        %p292 = pneg %p167
        %p293 = pneg %p196
        %p294 = pneg %p193
        %s295 = sand.u32 %s183, 1
        %s296 = scalar_lea.sflag [#allocation4], %s295
        %s297 = sand.u32 %s183, 1
        %s298 = smul.addr %s297, 8
        %s299 = scalar_lea.vmem [#allocation7], %s298
        %p300 = scmp.lt.s32.totalorder %s23, 1
        %s301 = scalar_select %p300, %s23, 1
        %s302 = smul.addr %s301, 8
        %s303 = scalar_lea.vmem %s0, %s302
        %v304 = vld [vmem:[%s303] sm:$0xff]
        %v305 = vlaneseq
        %v306 = vshrl.u32 %v305, 7
        %vm307 = vcmp.lt.s32.totalorder %v306, 0
        %v308 = vsub.s32 0, %v306
        %v309 = vsel %vm307, %v308, %v306
        %v310 = vshrl.u32 %v309, 3
        %v311 = vand.u32 %v309, 7
        %v312 = vsub.s32 0, %v311
        %v313 = vsel %vm307, %v312, %v311
        %vm314 = vcmp.ne.s32.totalorder %v313, 0
        %vm315 = vcmp.lt.s32.totalorder %v313, 0
        %vm316 = vmand %vm315, %vm314
        %v317 = vadd.s32 %v313, 8
        %v318 = vsel %vm316, %v317, %v313
        %vm319 = vcmp.ne.s32.totalorder %v318, 0
        %vm320 = vcmp.ne.s32.totalorder %v318, 7
        %v321 = vld [vmem:[%s3] sm:$0xff]
        %v322 = vld [vmem:[%s3 + $0x8] sm:$0xff]
        %v323 = vld [vmem:[%s3 + $0x10] sm:$0xff]
        %v324 = vld [vmem:[%s3 + $0x18] sm:$0xff]
        %v325 = vld [vmem:[%s3 + $0x20] sm:$0xff]
        %v326 = vld [vmem:[%s3 + $0x28] sm:$0xff]
        %v327 = vld [vmem:[%s3 + $0x30] sm:$0xff]
        %v328 = vld [vmem:[%s3 + $0x38] sm:$0xff]
        %v329 = vld [vmem:[%s3 + $0x40] sm:$0xff]
        %v330 = vld [vmem:[%s3 + $0x48] sm:$0xff]
        %v331 = vld [vmem:[%s3 + $0x50] sm:$0xff]
        %v332 = vld [vmem:[%s3 + $0x58] sm:$0xff]
        %v333 = vld [vmem:[%s3 + $0x60] sm:$0xff]
        %v334 = vld [vmem:[%s3 + $0x68] sm:$0xff]
        %v335 = vld [vmem:[%s3 + $0x70] sm:$0xff]
        %v336 = vld [vmem:[%s3 + $0x78] sm:$0xff]
        %v337 = vld [vmem:[%s4] sm:$0xf]
        %v338 = vld [vmem:[#allocation2] sm:$0xff]
        %v339 = vld [vmem:[#allocation2 + $0x8] sm:$0xff]
        %v340 = vld [vmem:[#allocation2 + $0x10] sm:$0xff]
        %v341 = vld [vmem:[#allocation2 + $0x18] sm:$0xff]
        %v342 = vld [vmem:[#allocation2 + $0x20] sm:$0xff]
        %v343 = vld [vmem:[#allocation2 + $0x28] sm:$0xff]
        %v344 = vld [vmem:[#allocation2 + $0x30] sm:$0xff]
        %v345 = vld [vmem:[#allocation2 + $0x38] sm:$0xff]
        %v346 = vld [vmem:[#allocation2 + $0x40] sm:$0xff]
        %v347 = vld [vmem:[#allocation2 + $0x48] sm:$0xff]
        %v348 = vld [vmem:[#allocation2 + $0x50] sm:$0xff]
        %v349 = vld [vmem:[#allocation2 + $0x58] sm:$0xff]
        %v350 = vld [vmem:[#allocation2 + $0x60] sm:$0xff]
        %v351 = vld [vmem:[#allocation2 + $0x68] sm:$0xff]
        %v352 = vld [vmem:[#allocation2 + $0x70] sm:$0xff]
        %v353 = vld [vmem:[#allocation2 + $0x78] sm:$0xff]
        %354 = vmatprep.subr.mxu0 0.0
        %355 = vmatpush1.msra.mxu0 %v338
        %356 = vmatprep.subr.mxu0 0.0
        %357 = vmatpush1.msra.mxu0 %v339
        %358 = vmatprep.subr.mxu0 0.0
        %359 = vmatpush1.msra.mxu0 %v340
        %360 = vmatprep.subr.mxu0 0.0
        %361 = vmatpush1.msra.mxu0 %v341
        %362 = vmatprep.subr.mxu0 0.0
        %363 = vmatpush1.msra.mxu0 %v342
        %364 = vmatprep.subr.mxu0 0.0
        %365 = vmatpush1.msra.mxu0 %v343
        %366 = vmatprep.subr.mxu0 0.0
        %367 = vmatpush1.msra.mxu0 %v344
        %368 = vmatprep.subr.mxu0 0.0
        %369 = vmatpush1.msra.mxu0 %v345
        %370 = vmatprep.subr.mxu0 0.0
        %371 = vmatpush1.msra.mxu0 %v346
        %372 = vmatprep.subr.mxu0 0.0
        %373 = vmatpush1.msra.mxu0 %v347
        %374 = vmatprep.subr.mxu0 0.0
        %375 = vmatpush1.msra.mxu0 %v348
        %376 = vmatprep.subr.mxu0 0.0
        %377 = vmatpush1.msra.mxu0 %v349
        %378 = vmatprep.subr.mxu0 0.0
        %379 = vmatpush1.msra.mxu0 %v350
        %380 = vmatprep.subr.mxu0 0.0
        %381 = vmatpush1.msra.mxu0 %v351
        %382 = vmatprep.subr.mxu0 0.0
        %383 = vmatpush1.msra.mxu0 %v352
        %384 = vmatprep.subr.mxu0 0.0
        %385 = vmatpush1.msra.mxu0 %v353
        %386 = vmatprep.subr.mxu0 0.0
        %387 = vmatpush1.msra.mxu0 0.0
        %388 = vmatprep.subr.mxu0 0.0
        %389 = vmatpush1.msra.mxu0 0.0
        %390 = vmatprep.subr.mxu0 0.0
        %391 = vmatpush1.msra.mxu0 0.0
        %392 = vmatprep.subr.mxu0 0.0
        %393 = vmatpush1.msra.mxu0 0.0
        %394 = vmatprep.subr.mxu0 0.0
        %395 = vmatpush1.msra.mxu0 0.0
        %396 = vmatprep.subr.mxu0 0.0
        %397 = vmatpush1.msra.mxu0 0.0
        %398 = vmatprep.subr.mxu0 0.0
        %399 = vmatpush1.msra.mxu0 0.0
        %400 = vmatprep.subr.mxu0 0.0
        %401 = vmatpush1.msra.mxu0 0.0
        %402 = vmatprep.subr.mxu0 0.0
        %403 = vmatpush1.msra.mxu0 0.0
        %404 = vmatprep.subr.mxu0 0.0
        %405 = vmatpush1.msra.mxu0 0.0
        %406 = vmatprep.subr.mxu0 0.0
        %407 = vmatpush1.msra.mxu0 0.0
        %408 = vmatprep.subr.mxu0 0.0
        %409 = vmatpush1.msra.mxu0 0.0
        %410 = vmatprep.subr.mxu0 0.0
        %411 = vmatpush1.msra.mxu0 0.0
        %412 = vmatprep.subr.mxu0 0.0
        %413 = vmatpush1.msra.mxu0 0.0
        %414 = vmatprep.subr.mxu0 0.0
        %415 = vmatpush1.msra.mxu0 0.0
        %416 = vmatprep.subr.mxu0 0.0
        %417 = vmatpush1.msra.mxu0 0.0
        %418 = vmatprep.mubr.f32.mxu0 0.0
        %419 = vmatmul.mubr.f32.gmra.mrb[0].mxu0 %v304
        %v420 = vpop.f32.mrb[0].mxu0
        %v421 = vadd.f32 0.0, %v420
        %v422 = vpop.f32.mrb[0].mxu0
        %423 = vdwg.mxu0
        %s424 = scalar_lea.vmem [#allocation2], 128
        %v425 = vld [vmem:[%s424] sm:$0xff]
        %v426 = vld [vmem:[%s424 + $0x8] sm:$0xff]
        %v427 = vld [vmem:[%s424 + $0x10] sm:$0xff]
        %v428 = vld [vmem:[%s424 + $0x18] sm:$0xff]
        %v429 = vld [vmem:[%s424 + $0x20] sm:$0xff]
        %v430 = vld [vmem:[%s424 + $0x28] sm:$0xff]
        %v431 = vld [vmem:[%s424 + $0x30] sm:$0xff]
        %v432 = vld [vmem:[%s424 + $0x38] sm:$0xff]
        %v433 = vld [vmem:[%s424 + $0x40] sm:$0xff]
        %v434 = vld [vmem:[%s424 + $0x48] sm:$0xff]
        %v435 = vld [vmem:[%s424 + $0x50] sm:$0xff]
        %v436 = vld [vmem:[%s424 + $0x58] sm:$0xff]
        %v437 = vld [vmem:[%s424 + $0x60] sm:$0xff]
        %v438 = vld [vmem:[%s424 + $0x68] sm:$0xff]
        %v439 = vld [vmem:[%s424 + $0x70] sm:$0xff]
        %v440 = vld [vmem:[%s424 + $0x78] sm:$0xff]
        %s441 = scalar_lea.vmem [#allocation2], 256
        %v442 = vld [vmem:[%s441] sm:$0xff]
        %v443 = vld [vmem:[%s441 + $0x8] sm:$0xff]
        %v444 = vld [vmem:[%s441 + $0x10] sm:$0xff]
        %v445 = vld [vmem:[%s441 + $0x18] sm:$0xff]
        %v446 = vld [vmem:[%s441 + $0x20] sm:$0xff]
        %v447 = vld [vmem:[%s441 + $0x28] sm:$0xff]
        %v448 = vld [vmem:[%s441 + $0x30] sm:$0xff]
        %v449 = vld [vmem:[%s441 + $0x38] sm:$0xff]
        %v450 = vld [vmem:[%s441 + $0x40] sm:$0xff]
        %v451 = vld [vmem:[%s441 + $0x48] sm:$0xff]
        %v452 = vld [vmem:[%s441 + $0x50] sm:$0xff]
        %v453 = vld [vmem:[%s441 + $0x58] sm:$0xff]
        %v454 = vld [vmem:[%s441 + $0x60] sm:$0xff]
        %v455 = vld [vmem:[%s441 + $0x68] sm:$0xff]
        %v456 = vld [vmem:[%s441 + $0x70] sm:$0xff]
        %v457 = vld [vmem:[%s441 + $0x78] sm:$0xff]
        %458 = vmatprep.subr.mxu0 0.0
        %459 = vmatpush1.msra.mxu0 %v442
        %460 = vmatprep.subr.mxu0 0.0
        %461 = vmatpush1.msra.mxu0 %v443
        %462 = vmatprep.subr.mxu0 0.0
        %463 = vmatpush1.msra.mxu0 %v444
        %464 = vmatprep.subr.mxu0 0.0
        %465 = vmatpush1.msra.mxu0 %v445
        %466 = vmatprep.subr.mxu0 0.0
        %467 = vmatpush1.msra.mxu0 %v446
        %468 = vmatprep.subr.mxu0 0.0
        %469 = vmatpush1.msra.mxu0 %v447
        %470 = vmatprep.subr.mxu0 0.0
        %471 = vmatpush1.msra.mxu0 %v448
        %472 = vmatprep.subr.mxu0 0.0
        %473 = vmatpush1.msra.mxu0 %v449
        %474 = vmatprep.subr.mxu0 0.0
        %475 = vmatpush1.msra.mxu0 %v450
        %476 = vmatprep.subr.mxu0 0.0
        %477 = vmatpush1.msra.mxu0 %v451
        %478 = vmatprep.subr.mxu0 0.0
        %479 = vmatpush1.msra.mxu0 %v452
        %480 = vmatprep.subr.mxu0 0.0
        %481 = vmatpush1.msra.mxu0 %v453
        %482 = vmatprep.subr.mxu0 0.0
        %483 = vmatpush1.msra.mxu0 %v454
        %484 = vmatprep.subr.mxu0 0.0
        %485 = vmatpush1.msra.mxu0 %v455
        %486 = vmatprep.subr.mxu0 0.0
        %487 = vmatpush1.msra.mxu0 %v456
        %488 = vmatprep.subr.mxu0 0.0
        %489 = vmatpush1.msra.mxu0 %v457
        %490 = vmatprep.subr.mxu0 0.0
        %491 = vmatpush1.msra.mxu0 0.0
        %492 = vmatprep.subr.mxu0 0.0
        %493 = vmatpush1.msra.mxu0 0.0
        %494 = vmatprep.subr.mxu0 0.0
        %495 = vmatpush1.msra.mxu0 0.0
        %496 = vmatprep.subr.mxu0 0.0
        %497 = vmatpush1.msra.mxu0 0.0
        %498 = vmatprep.subr.mxu0 0.0
        %499 = vmatpush1.msra.mxu0 0.0
        %500 = vmatprep.subr.mxu0 0.0
        %501 = vmatpush1.msra.mxu0 0.0
        %502 = vmatprep.subr.mxu0 0.0
        %503 = vmatpush1.msra.mxu0 0.0
        %504 = vmatprep.subr.mxu0 0.0
        %505 = vmatpush1.msra.mxu0 0.0
        %506 = vmatprep.subr.mxu0 0.0
        %507 = vmatpush1.msra.mxu0 0.0
        %508 = vmatprep.subr.mxu0 0.0
        %509 = vmatpush1.msra.mxu0 0.0
        %510 = vmatprep.subr.mxu0 0.0
        %511 = vmatpush1.msra.mxu0 0.0
        %512 = vmatprep.subr.mxu0 0.0
        %513 = vmatpush1.msra.mxu0 0.0
        %514 = vmatprep.subr.mxu0 0.0
        %515 = vmatpush1.msra.mxu0 0.0
        %516 = vmatprep.subr.mxu0 0.0
        %517 = vmatpush1.msra.mxu0 0.0
        %518 = vmatprep.subr.mxu0 0.0
        %519 = vmatpush1.msra.mxu0 0.0
        %520 = vmatprep.subr.mxu0 0.0
        %521 = vmatpush1.msra.mxu0 0.0
        %522 = vmatprep.mubr.f32.mxu0 0.0
        %523 = vmatmul.mubr.f32.gmra.mrb[0].mxu0 %v304
        %v524 = vpop.f32.mrb[0].mxu0
        %v525 = vadd.f32 0.0, %v524
        %v526 = vpop.f32.mrb[0].mxu0
        %527 = vdwg.mxu0
        %v528 = vrot.slane %v421, 7
        %v529 = vsel %vm319, %v528, 0.0
        %v530 = vrot.slane %v525, 1
        %v531 = vsel %vm320, %v530, 0.0
        %532 = vmatprep.subr.mxu0 0.0
        %533 = vmatpush1.msra.mxu0 %v425
        %534 = vmatprep.subr.mxu0 0.0
        %535 = vmatpush1.msra.mxu0 %v426
        %536 = vmatprep.subr.mxu0 0.0
        %537 = vmatpush1.msra.mxu0 %v427
        %538 = vmatprep.subr.mxu0 0.0
        %539 = vmatpush1.msra.mxu0 %v428
        %540 = vmatprep.subr.mxu0 0.0
        %541 = vmatpush1.msra.mxu0 %v429
        %542 = vmatprep.subr.mxu0 0.0
        %543 = vmatpush1.msra.mxu0 %v430
        %544 = vmatprep.subr.mxu0 0.0
        %545 = vmatpush1.msra.mxu0 %v431
        %546 = vmatprep.subr.mxu0 0.0
        %547 = vmatpush1.msra.mxu0 %v432
        %548 = vmatprep.subr.mxu0 0.0
        %549 = vmatpush1.msra.mxu0 %v433
        %550 = vmatprep.subr.mxu0 0.0
        %551 = vmatpush1.msra.mxu0 %v434
        %552 = vmatprep.subr.mxu0 0.0
        %553 = vmatpush1.msra.mxu0 %v435
        %554 = vmatprep.subr.mxu0 0.0
        %555 = vmatpush1.msra.mxu0 %v436
        %556 = vmatprep.subr.mxu0 0.0
        %557 = vmatpush1.msra.mxu0 %v437
        %558 = vmatprep.subr.mxu0 0.0
        %559 = vmatpush1.msra.mxu0 %v438
        %560 = vmatprep.subr.mxu0 0.0
        %561 = vmatpush1.msra.mxu0 %v439
        %562 = vmatprep.subr.mxu0 0.0
        %563 = vmatpush1.msra.mxu0 %v440
        %564 = vmatprep.subr.mxu0 0.0
        %565 = vmatpush1.msra.mxu0 0.0
        %566 = vmatprep.subr.mxu0 0.0
        %567 = vmatpush1.msra.mxu0 0.0
        %568 = vmatprep.subr.mxu0 0.0
        %569 = vmatpush1.msra.mxu0 0.0
        %570 = vmatprep.subr.mxu0 0.0
        %571 = vmatpush1.msra.mxu0 0.0
        %572 = vmatprep.subr.mxu0 0.0
        %573 = vmatpush1.msra.mxu0 0.0
        %574 = vmatprep.subr.mxu0 0.0
        %575 = vmatpush1.msra.mxu0 0.0
        %576 = vmatprep.subr.mxu0 0.0
        %577 = vmatpush1.msra.mxu0 0.0
        %578 = vmatprep.subr.mxu0 0.0
        %579 = vmatpush1.msra.mxu0 0.0
        %580 = vmatprep.subr.mxu0 0.0
        %581 = vmatpush1.msra.mxu0 0.0
        %582 = vmatprep.subr.mxu0 0.0
        %583 = vmatpush1.msra.mxu0 0.0
        %584 = vmatprep.subr.mxu0 0.0
        %585 = vmatpush1.msra.mxu0 0.0
        %586 = vmatprep.subr.mxu0 0.0
        %587 = vmatpush1.msra.mxu0 0.0
        %588 = vmatprep.subr.mxu0 0.0
        %589 = vmatpush1.msra.mxu0 0.0
        %590 = vmatprep.subr.mxu0 0.0
        %591 = vmatpush1.msra.mxu0 0.0
        %592 = vmatprep.subr.mxu0 0.0
        %593 = vmatpush1.msra.mxu0 0.0
        %594 = vmatprep.subr.mxu0 0.0
        %595 = vmatpush1.msra.mxu0 0.0
        %596 = vmatprep.mubr.f32.mxu0 0.0
        %597 = vmatmul.mubr.f32.gmra.mrb[0].mxu0 %v304
        %v598 = vpop.f32.mrb[0].mxu0
        %v599 = vadd.f32 %v529, %v598
        %v600 = vpop.f32.mrb[0].mxu0
        %601 = vdwg.mxu0
        %v602 = vadd.f32 %v599, %v531
        %v603 = vrot.slane %v602, 4
        %v604 = vadd.f32 %v602, %v603
        %v605 = vrot.slane %v604, 2
        %v606 = vadd.f32 %v604, %v605
        %v607 = vrot.slane %v606, 1
        %v608 = vadd.f32 %v606, %v607
        %v609 = vmul.f32 %v602, %v602
        %v610 = vrot.slane %v609, 4
        %v611 = vadd.f32 %v609, %v610
        %v612 = vrot.slane %v611, 2
        %v613 = vadd.f32 %v611, %v612
        %v614 = vrot.slane %v613, 1
        %v615 = vadd.f32 %v613, %v614
        %616 = vmatprep.subr.mxu0 0.0
        %617 = vmatpush1.msra.mxu0 %v321
        %618 = vmatprep.subr.mxu0 0.0
        %619 = vmatpush1.msra.mxu0 %v322
        %620 = vmatprep.subr.mxu0 0.0
        %621 = vmatpush1.msra.mxu0 %v323
        %622 = vmatprep.subr.mxu0 0.0
        %623 = vmatpush1.msra.mxu0 %v324
        %624 = vmatprep.subr.mxu0 0.0
        %625 = vmatpush1.msra.mxu0 %v325
        %626 = vmatprep.subr.mxu0 0.0
        %627 = vmatpush1.msra.mxu0 %v326
        %628 = vmatprep.subr.mxu0 0.0
        %629 = vmatpush1.msra.mxu0 %v327
        %630 = vmatprep.subr.mxu0 0.0
        %631 = vmatpush1.msra.mxu0 %v328
        %632 = vmatprep.subr.mxu0 0.0
        %633 = vmatpush1.msra.mxu0 %v329
        %634 = vmatprep.subr.mxu0 0.0
        %635 = vmatpush1.msra.mxu0 %v330
        %636 = vmatprep.subr.mxu0 0.0
        %637 = vmatpush1.msra.mxu0 %v331
        %638 = vmatprep.subr.mxu0 0.0
        %639 = vmatpush1.msra.mxu0 %v332
        %640 = vmatprep.subr.mxu0 0.0
        %641 = vmatpush1.msra.mxu0 %v333
        %642 = vmatprep.subr.mxu0 0.0
        %643 = vmatpush1.msra.mxu0 %v334
        %644 = vmatprep.subr.mxu0 0.0
        %645 = vmatpush1.msra.mxu0 %v335
        %646 = vmatprep.subr.mxu0 0.0
        %647 = vmatpush1.msra.mxu0 %v336
        %648 = vmatprep.subr.mxu0 0.0
        %649 = vmatpush1.msra.mxu0 0.0
        %650 = vmatprep.subr.mxu0 0.0
        %651 = vmatpush1.msra.mxu0 0.0
        %652 = vmatprep.subr.mxu0 0.0
        %653 = vmatpush1.msra.mxu0 0.0
        %654 = vmatprep.subr.mxu0 0.0
        %655 = vmatpush1.msra.mxu0 0.0
        %656 = vmatprep.subr.mxu0 0.0
        %657 = vmatpush1.msra.mxu0 0.0
        %658 = vmatprep.subr.mxu0 0.0
        %659 = vmatpush1.msra.mxu0 0.0
        %660 = vmatprep.subr.mxu0 0.0
        %661 = vmatpush1.msra.mxu0 0.0
        %662 = vmatprep.subr.mxu0 0.0
        %663 = vmatpush1.msra.mxu0 0.0
        %664 = vmatprep.subr.mxu0 0.0
        %665 = vmatpush1.msra.mxu0 0.0
        %666 = vmatprep.subr.mxu0 0.0
        %667 = vmatpush1.msra.mxu0 0.0
        %668 = vmatprep.subr.mxu0 0.0
        %669 = vmatpush1.msra.mxu0 0.0
        %670 = vmatprep.subr.mxu0 0.0
        %671 = vmatpush1.msra.mxu0 0.0
        %672 = vmatprep.subr.mxu0 0.0
        %673 = vmatpush1.msra.mxu0 0.0
        %674 = vmatprep.subr.mxu0 0.0
        %675 = vmatpush1.msra.mxu0 0.0
        %676 = vmatprep.subr.mxu0 0.0
        %677 = vmatpush1.msra.mxu0 0.0
        %678 = vmatprep.subr.mxu0 0.0
        %679 = vmatpush1.msra.mxu0 0.0
        %680 = vmatprep.mubr.f32.mxu0 0.0
        %681 = vmatmul.mubr.f32.gmra.mrb[0].mxu0 %v608
        %v682 = vpop.f32.mrb[0].mxu0
        %v683 = vadd.f32 0.0, %v682
        %v684 = vpop.f32.mrb[0].mxu0
        %685 = vdwg.mxu0
        %686 = vmatprep.subr.mxu0 0.0
        %687 = vmatpush1.msra.mxu0 %v321
        %688 = vmatprep.subr.mxu0 0.0
        %689 = vmatpush1.msra.mxu0 %v322
        %690 = vmatprep.subr.mxu0 0.0
        %691 = vmatpush1.msra.mxu0 %v323
        %692 = vmatprep.subr.mxu0 0.0
        %693 = vmatpush1.msra.mxu0 %v324
        %694 = vmatprep.subr.mxu0 0.0
        %695 = vmatpush1.msra.mxu0 %v325
        %696 = vmatprep.subr.mxu0 0.0
        %697 = vmatpush1.msra.mxu0 %v326
        %698 = vmatprep.subr.mxu0 0.0
        %699 = vmatpush1.msra.mxu0 %v327
        %700 = vmatprep.subr.mxu0 0.0
        %701 = vmatpush1.msra.mxu0 %v328
        %702 = vmatprep.subr.mxu0 0.0
        %703 = vmatpush1.msra.mxu0 %v329
        %704 = vmatprep.subr.mxu0 0.0
        %705 = vmatpush1.msra.mxu0 %v330
        %706 = vmatprep.subr.mxu0 0.0
        %707 = vmatpush1.msra.mxu0 %v331
        %708 = vmatprep.subr.mxu0 0.0
        %709 = vmatpush1.msra.mxu0 %v332
        %710 = vmatprep.subr.mxu0 0.0
        %711 = vmatpush1.msra.mxu0 %v333
        %712 = vmatprep.subr.mxu0 0.0
        %713 = vmatpush1.msra.mxu0 %v334
        %714 = vmatprep.subr.mxu0 0.0
        %715 = vmatpush1.msra.mxu0 %v335
        %716 = vmatprep.subr.mxu0 0.0
        %717 = vmatpush1.msra.mxu0 %v336
        %718 = vmatprep.subr.mxu0 0.0
        %719 = vmatpush1.msra.mxu0 0.0
        %720 = vmatprep.subr.mxu0 0.0
        %721 = vmatpush1.msra.mxu0 0.0
        %722 = vmatprep.subr.mxu0 0.0
        %723 = vmatpush1.msra.mxu0 0.0
        %724 = vmatprep.subr.mxu0 0.0
        %725 = vmatpush1.msra.mxu0 0.0
        %726 = vmatprep.subr.mxu0 0.0
        %727 = vmatpush1.msra.mxu0 0.0
        %728 = vmatprep.subr.mxu0 0.0
        %729 = vmatpush1.msra.mxu0 0.0
        %730 = vmatprep.subr.mxu0 0.0
        %731 = vmatpush1.msra.mxu0 0.0
        %732 = vmatprep.subr.mxu0 0.0
        %733 = vmatpush1.msra.mxu0 0.0
        %734 = vmatprep.subr.mxu0 0.0
        %735 = vmatpush1.msra.mxu0 0.0
        %736 = vmatprep.subr.mxu0 0.0
        %737 = vmatpush1.msra.mxu0 0.0
        %738 = vmatprep.subr.mxu0 0.0
        %739 = vmatpush1.msra.mxu0 0.0
        %740 = vmatprep.subr.mxu0 0.0
        %741 = vmatpush1.msra.mxu0 0.0
        %742 = vmatprep.subr.mxu0 0.0
        %743 = vmatpush1.msra.mxu0 0.0
        %744 = vmatprep.subr.mxu0 0.0
        %745 = vmatpush1.msra.mxu0 0.0
        %746 = vmatprep.subr.mxu0 0.0
        %747 = vmatpush1.msra.mxu0 0.0
        %748 = vmatprep.subr.mxu0 0.0
        %749 = vmatpush1.msra.mxu0 0.0
        %750 = vmatprep.mubr.f32.mxu0 0.0
        %751 = vmatmul.mubr.f32.gmra.mrb[0].mxu0 %v615
        %v752 = vpop.f32.mrb[0].mxu0
        %v753 = vadd.f32 0.0, %v752
        %v754 = vpop.f32.mrb[0].mxu0
        %755 = vdwg.mxu0
        %v756 = vmul.f32 %v683, %v683
        %v757 = vsub.f32 %v753, %v756
        %v758 = vmax.f32 %v757, 0.0
        %v759 = vadd.f32 %v758, 1e-05
        %v760 = vrsqrt.pop %v759
        %v761 = vmul.f32 %v683, %v760
        %vm762 = vcmask 31744
        %v764 = vsel %vm762, %v760, 0
        %vm766 = vcmask 1043456
        %v768 = vsel %vm766, %v337, 0
        %770 = vmatprep.subr.mxu0 0.0
        %771 = vmatpush1.msra.mxu0 %v768
        %772 = vmatprep.subr.mxu0 0.0
        %773 = vmatpush1.msra.mxu0 0.0
        %774 = vmatprep.subr.mxu0 0.0
        %775 = vmatpush1.msra.mxu0 0.0
        %776 = vmatprep.subr.mxu0 0.0
        %777 = vmatpush1.msra.mxu0 0.0
        %778 = vmatprep.subr.mxu0 0.0
        %779 = vmatpush1.msra.mxu0 0.0
        %780 = vmatprep.subr.mxu0 0.0
        %781 = vmatpush1.msra.mxu0 0.0
        %782 = vmatprep.subr.mxu0 0.0
        %783 = vmatpush1.msra.mxu0 0.0
        %784 = vmatprep.subr.mxu0 0.0
        %785 = vmatpush1.msra.mxu0 0.0
        %786 = vmatprep.subr.mxu0 0.0
        %787 = vmatpush1.msra.mxu0 0.0
        %788 = vmatprep.subr.mxu0 0.0
        %789 = vmatpush1.msra.mxu0 0.0
        %790 = vmatprep.subr.mxu0 0.0
        %791 = vmatpush1.msra.mxu0 0.0
        %792 = vmatprep.subr.mxu0 0.0
        %793 = vmatpush1.msra.mxu0 0.0
        %794 = vmatprep.subr.mxu0 0.0
        %795 = vmatpush1.msra.mxu0 0.0
        %796 = vmatprep.subr.mxu0 0.0
        %797 = vmatpush1.msra.mxu0 0.0
        %798 = vmatprep.subr.mxu0 0.0
        %799 = vmatpush1.msra.mxu0 0.0
        %800 = vmatprep.subr.mxu0 0.0
        %801 = vmatpush1.msra.mxu0 0.0
        %802 = vmatprep.subr.mxu0 0.0
        %803 = vmatpush1.msra.mxu0 0.0
        %804 = vmatprep.subr.mxu0 0.0
        %805 = vmatpush1.msra.mxu0 0.0
        %806 = vmatprep.subr.mxu0 0.0
        %807 = vmatpush1.msra.mxu0 0.0
        %808 = vmatprep.subr.mxu0 0.0
        %809 = vmatpush1.msra.mxu0 0.0
        %810 = vmatprep.subr.mxu0 0.0
        %811 = vmatpush1.msra.mxu0 0.0
        %812 = vmatprep.subr.mxu0 0.0
        %813 = vmatpush1.msra.mxu0 0.0
        %814 = vmatprep.subr.mxu0 0.0
        %815 = vmatpush1.msra.mxu0 0.0
        %816 = vmatprep.subr.mxu0 0.0
        %817 = vmatpush1.msra.mxu0 0.0
        %818 = vmatprep.subr.mxu0 0.0
        %819 = vmatpush1.msra.mxu0 0.0
        %820 = vmatprep.subr.mxu0 0.0
        %821 = vmatpush1.msra.mxu0 0.0
        %822 = vmatprep.subr.mxu0 0.0
        %823 = vmatpush1.msra.mxu0 0.0
        %824 = vmatprep.subr.mxu0 0.0
        %825 = vmatpush1.msra.mxu0 0.0
        %826 = vmatprep.subr.mxu0 0.0
        %827 = vmatpush1.msra.mxu0 0.0
        %828 = vmatprep.subr.mxu0 0.0
        %829 = vmatpush1.msra.mxu0 0.0
        %830 = vmatprep.subr.mxu0 0.0
        %831 = vmatpush1.msra.mxu0 0.0
        %832 = vmatprep.subr.mxu0 0.0
        %833 = vmatpush1.msra.mxu0 0.0
        %834 = vmatprep.mubr.f32.mxu0 0.0
        %835 = vmatmul.mubr.f32.gmra.mrb[0].mxu0 %v764
        %v836 = vpop.f32.mrb[0].mxu0
        %v837 = vadd.f32 0.0, %v836
        %v838 = vpop.f32.mrb[0].mxu0
        %839 = vdwg.mxu0
        %v841 = vsel %vm762, %v761, 0
        %843 = vmatprep.subr.mxu0 0.0
        %844 = vmatpush1.msra.mxu0 %v768
        %845 = vmatprep.subr.mxu0 0.0
        %846 = vmatpush1.msra.mxu0 0.0
        %847 = vmatprep.subr.mxu0 0.0
        %848 = vmatpush1.msra.mxu0 0.0
        %849 = vmatprep.subr.mxu0 0.0
        %850 = vmatpush1.msra.mxu0 0.0
        %851 = vmatprep.subr.mxu0 0.0
        %852 = vmatpush1.msra.mxu0 0.0
        %853 = vmatprep.subr.mxu0 0.0
        %854 = vmatpush1.msra.mxu0 0.0
        %855 = vmatprep.subr.mxu0 0.0
        %856 = vmatpush1.msra.mxu0 0.0
        %857 = vmatprep.subr.mxu0 0.0
        %858 = vmatpush1.msra.mxu0 0.0
        %859 = vmatprep.subr.mxu0 0.0
        %860 = vmatpush1.msra.mxu0 0.0
        %861 = vmatprep.subr.mxu0 0.0
        %862 = vmatpush1.msra.mxu0 0.0
        %863 = vmatprep.subr.mxu0 0.0
        %864 = vmatpush1.msra.mxu0 0.0
        %865 = vmatprep.subr.mxu0 0.0
        %866 = vmatpush1.msra.mxu0 0.0
        %867 = vmatprep.subr.mxu0 0.0
        %868 = vmatpush1.msra.mxu0 0.0
        %869 = vmatprep.subr.mxu0 0.0
        %870 = vmatpush1.msra.mxu0 0.0
        %871 = vmatprep.subr.mxu0 0.0
        %872 = vmatpush1.msra.mxu0 0.0
        %873 = vmatprep.subr.mxu0 0.0
        %874 = vmatpush1.msra.mxu0 0.0
        %875 = vmatprep.subr.mxu0 0.0
        %876 = vmatpush1.msra.mxu0 0.0
        %877 = vmatprep.subr.mxu0 0.0
        %878 = vmatpush1.msra.mxu0 0.0
        %879 = vmatprep.subr.mxu0 0.0
        %880 = vmatpush1.msra.mxu0 0.0
        %881 = vmatprep.subr.mxu0 0.0
        %882 = vmatpush1.msra.mxu0 0.0
        %883 = vmatprep.subr.mxu0 0.0
        %884 = vmatpush1.msra.mxu0 0.0
        %885 = vmatprep.subr.mxu0 0.0
        %886 = vmatpush1.msra.mxu0 0.0
        %887 = vmatprep.subr.mxu0 0.0
        %888 = vmatpush1.msra.mxu0 0.0
        %889 = vmatprep.subr.mxu0 0.0
        %890 = vmatpush1.msra.mxu0 0.0
        %891 = vmatprep.subr.mxu0 0.0
        %892 = vmatpush1.msra.mxu0 0.0
        %893 = vmatprep.subr.mxu0 0.0
        %894 = vmatpush1.msra.mxu0 0.0
        %895 = vmatprep.subr.mxu0 0.0
        %896 = vmatpush1.msra.mxu0 0.0
        %897 = vmatprep.subr.mxu0 0.0
        %898 = vmatpush1.msra.mxu0 0.0
        %899 = vmatprep.subr.mxu0 0.0
        %900 = vmatpush1.msra.mxu0 0.0
        %901 = vmatprep.subr.mxu0 0.0
        %902 = vmatpush1.msra.mxu0 0.0
        %903 = vmatprep.subr.mxu0 0.0
        %904 = vmatpush1.msra.mxu0 0.0
        %905 = vmatprep.subr.mxu0 0.0
        %906 = vmatpush1.msra.mxu0 0.0
        %907 = vmatprep.mubr.f32.mxu0 0.0
        %908 = vmatmul.mubr.f32.gmra.mrb[0].mxu0 %v841
        %v909 = vpop.f32.mrb[0].mxu0
        %v910 = vadd.f32 0.0, %v909
        %v911 = vpop.f32.mrb[0].mxu0
        %912 = vdwg.mxu0
        %v913 = vlaneseq
        %v914 = vshrl.u32 %v913, 7
        %v915 = vsub.s32 0, %v914
        %v916 = vrot.slane %v837, %v915
        %v917 = vmul.f32 %v602, %v916
        %v918 = vlaneseq
        %v919 = vshrl.u32 %v918, 7
        %v920 = vsub.s32 0, %v919
        %v921 = vrot.slane %v910, %v920
        %v922 = vsub.f32 %v917, %v921
        %v923 = vmax.f32 %v922, 0.0
        %v924 = vld [vmem:[#allocation5] sm:$0xff]
        %v925 = vld [vmem:[#allocation5 + $0x8] sm:$0xff]
        %v926 = vld [vmem:[#allocation5 + $0x10] sm:$0xff]
        %v927 = vld [vmem:[#allocation5 + $0x18] sm:$0xff]
        %v928 = vld [vmem:[#allocation5 + $0x20] sm:$0xff]
        %v929 = vld [vmem:[#allocation5 + $0x28] sm:$0xff]
        %v930 = vld [vmem:[#allocation5 + $0x30] sm:$0xff]
        %v931 = vld [vmem:[#allocation5 + $0x38] sm:$0xff]
        %v932 = vld [vmem:[#allocation5 + $0x40] sm:$0xff]
        %v933 = vld [vmem:[#allocation5 + $0x48] sm:$0xff]
        %v934 = vld [vmem:[#allocation5 + $0x50] sm:$0xff]
        %v935 = vld [vmem:[#allocation5 + $0x58] sm:$0xff]
        %v936 = vld [vmem:[#allocation5 + $0x60] sm:$0xff]
        %v937 = vld [vmem:[#allocation5 + $0x68] sm:$0xff]
        %v938 = vld [vmem:[#allocation5 + $0x70] sm:$0xff]
        %v939 = vld [vmem:[#allocation5 + $0x78] sm:$0xff]
        %940 = vmatprep.subr.mxu0 0.0
        %941 = vmatpush1.msra.mxu0 %v924
        %942 = vmatprep.subr.mxu0 0.0
        %943 = vmatpush1.msra.mxu0 %v925
        %944 = vmatprep.subr.mxu0 0.0
        %945 = vmatpush1.msra.mxu0 %v926
        %946 = vmatprep.subr.mxu0 0.0
        %947 = vmatpush1.msra.mxu0 %v927
        %948 = vmatprep.subr.mxu0 0.0
        %949 = vmatpush1.msra.mxu0 %v928
        %950 = vmatprep.subr.mxu0 0.0
        %951 = vmatpush1.msra.mxu0 %v929
        %952 = vmatprep.subr.mxu0 0.0
        %953 = vmatpush1.msra.mxu0 %v930
        %954 = vmatprep.subr.mxu0 0.0
        %955 = vmatpush1.msra.mxu0 %v931
        %956 = vmatprep.subr.mxu0 0.0
        %957 = vmatpush1.msra.mxu0 %v932
        %958 = vmatprep.subr.mxu0 0.0
        %959 = vmatpush1.msra.mxu0 %v933
        %960 = vmatprep.subr.mxu0 0.0
        %961 = vmatpush1.msra.mxu0 %v934
        %962 = vmatprep.subr.mxu0 0.0
        %963 = vmatpush1.msra.mxu0 %v935
        %964 = vmatprep.subr.mxu0 0.0
        %965 = vmatpush1.msra.mxu0 %v936
        %966 = vmatprep.subr.mxu0 0.0
        %967 = vmatpush1.msra.mxu0 %v937
        %968 = vmatprep.subr.mxu0 0.0
        %969 = vmatpush1.msra.mxu0 %v938
        %970 = vmatprep.subr.mxu0 0.0
        %971 = vmatpush1.msra.mxu0 %v939
        %972 = vmatprep.subr.mxu0 0.0
        %973 = vmatpush1.msra.mxu0 0.0
        %974 = vmatprep.subr.mxu0 0.0
        %975 = vmatpush1.msra.mxu0 0.0
        %976 = vmatprep.subr.mxu0 0.0
        %977 = vmatpush1.msra.mxu0 0.0
        %978 = vmatprep.subr.mxu0 0.0
        %979 = vmatpush1.msra.mxu0 0.0
        %980 = vmatprep.subr.mxu0 0.0
        %981 = vmatpush1.msra.mxu0 0.0
        %982 = vmatprep.subr.mxu0 0.0
        %983 = vmatpush1.msra.mxu0 0.0
        %984 = vmatprep.subr.mxu0 0.0
        %985 = vmatpush1.msra.mxu0 0.0
        %986 = vmatprep.subr.mxu0 0.0
        %987 = vmatpush1.msra.mxu0 0.0
        %988 = vmatprep.subr.mxu0 0.0
        %989 = vmatpush1.msra.mxu0 0.0
        %990 = vmatprep.subr.mxu0 0.0
        %991 = vmatpush1.msra.mxu0 0.0
        %992 = vmatprep.subr.mxu0 0.0
        %993 = vmatpush1.msra.mxu0 0.0
        %994 = vmatprep.subr.mxu0 0.0
        %995 = vmatpush1.msra.mxu0 0.0
        %996 = vmatprep.subr.mxu0 0.0
        %997 = vmatpush1.msra.mxu0 0.0
        %998 = vmatprep.subr.mxu0 0.0
        %999 = vmatpush1.msra.mxu0 0.0
        %1000 = vmatprep.subr.mxu0 0.0
        %1001 = vmatpush1.msra.mxu0 0.0
        %1002 = vmatprep.subr.mxu0 0.0
        %1003 = vmatpush1.msra.mxu0 0.0
        %1004 = vmatprep.mubr.f32.mxu0 0.0
        %1005 = vmatmul.mubr.f32.gmra.mrb[0].mxu0 %v923
        %v1006 = vpop.f32.mrb[0].mxu0
        %v1007 = vadd.f32 0.0, %v1006
        %v1008 = vpop.f32.mrb[0].mxu0
        %1009 = vdwg.mxu0
        %s1010 = scalar_lea.vmem [#allocation5], 128
        %v1011 = vld [vmem:[%s1010] sm:$0xff]
        %v1012 = vld [vmem:[%s1010 + $0x8] sm:$0xff]
        %v1013 = vld [vmem:[%s1010 + $0x10] sm:$0xff]
        %v1014 = vld [vmem:[%s1010 + $0x18] sm:$0xff]
        %v1015 = vld [vmem:[%s1010 + $0x20] sm:$0xff]
        %v1016 = vld [vmem:[%s1010 + $0x28] sm:$0xff]
        %v1017 = vld [vmem:[%s1010 + $0x30] sm:$0xff]
        %v1018 = vld [vmem:[%s1010 + $0x38] sm:$0xff]
        %v1019 = vld [vmem:[%s1010 + $0x40] sm:$0xff]
        %v1020 = vld [vmem:[%s1010 + $0x48] sm:$0xff]
        %v1021 = vld [vmem:[%s1010 + $0x50] sm:$0xff]
        %v1022 = vld [vmem:[%s1010 + $0x58] sm:$0xff]
        %v1023 = vld [vmem:[%s1010 + $0x60] sm:$0xff]
        %v1024 = vld [vmem:[%s1010 + $0x68] sm:$0xff]
        %v1025 = vld [vmem:[%s1010 + $0x70] sm:$0xff]
        %v1026 = vld [vmem:[%s1010 + $0x78] sm:$0xff]
        %s1027 = scalar_lea.vmem [#allocation5], 256
        %v1028 = vld [vmem:[%s1027] sm:$0xff]
        %v1029 = vld [vmem:[%s1027 + $0x8] sm:$0xff]
        %v1030 = vld [vmem:[%s1027 + $0x10] sm:$0xff]
        %v1031 = vld [vmem:[%s1027 + $0x18] sm:$0xff]
        %v1032 = vld [vmem:[%s1027 + $0x20] sm:$0xff]
        %v1033 = vld [vmem:[%s1027 + $0x28] sm:$0xff]
        %v1034 = vld [vmem:[%s1027 + $0x30] sm:$0xff]
        %v1035 = vld [vmem:[%s1027 + $0x38] sm:$0xff]
        %v1036 = vld [vmem:[%s1027 + $0x40] sm:$0xff]
        %v1037 = vld [vmem:[%s1027 + $0x48] sm:$0xff]
        %v1038 = vld [vmem:[%s1027 + $0x50] sm:$0xff]
        %v1039 = vld [vmem:[%s1027 + $0x58] sm:$0xff]
        %v1040 = vld [vmem:[%s1027 + $0x60] sm:$0xff]
        %v1041 = vld [vmem:[%s1027 + $0x68] sm:$0xff]
        %v1042 = vld [vmem:[%s1027 + $0x70] sm:$0xff]
        %v1043 = vld [vmem:[%s1027 + $0x78] sm:$0xff]
        %1044 = vmatprep.subr.mxu0 0.0
        %1045 = vmatpush1.msra.mxu0 %v1028
        %1046 = vmatprep.subr.mxu0 0.0
        %1047 = vmatpush1.msra.mxu0 %v1029
        %1048 = vmatprep.subr.mxu0 0.0
        %1049 = vmatpush1.msra.mxu0 %v1030
        %1050 = vmatprep.subr.mxu0 0.0
        %1051 = vmatpush1.msra.mxu0 %v1031
        %1052 = vmatprep.subr.mxu0 0.0
        %1053 = vmatpush1.msra.mxu0 %v1032
        %1054 = vmatprep.subr.mxu0 0.0
        %1055 = vmatpush1.msra.mxu0 %v1033
        %1056 = vmatprep.subr.mxu0 0.0
        %1057 = vmatpush1.msra.mxu0 %v1034
        %1058 = vmatprep.subr.mxu0 0.0
        %1059 = vmatpush1.msra.mxu0 %v1035
        %1060 = vmatprep.subr.mxu0 0.0
        %1061 = vmatpush1.msra.mxu0 %v1036
        %1062 = vmatprep.subr.mxu0 0.0
        %1063 = vmatpush1.msra.mxu0 %v1037
        %1064 = vmatprep.subr.mxu0 0.0
        %1065 = vmatpush1.msra.mxu0 %v1038
        %1066 = vmatprep.subr.mxu0 0.0
        %1067 = vmatpush1.msra.mxu0 %v1039
        %1068 = vmatprep.subr.mxu0 0.0
        %1069 = vmatpush1.msra.mxu0 %v1040
        %1070 = vmatprep.subr.mxu0 0.0
        %1071 = vmatpush1.msra.mxu0 %v1041
        %1072 = vmatprep.subr.mxu0 0.0
        %1073 = vmatpush1.msra.mxu0 %v1042
        %1074 = vmatprep.subr.mxu0 0.0
        %1075 = vmatpush1.msra.mxu0 %v1043
        %1076 = vmatprep.subr.mxu0 0.0
        %1077 = vmatpush1.msra.mxu0 0.0
        %1078 = vmatprep.subr.mxu0 0.0
        %1079 = vmatpush1.msra.mxu0 0.0
        %1080 = vmatprep.subr.mxu0 0.0
        %1081 = vmatpush1.msra.mxu0 0.0
        %1082 = vmatprep.subr.mxu0 0.0
        %1083 = vmatpush1.msra.mxu0 0.0
        %1084 = vmatprep.subr.mxu0 0.0
        %1085 = vmatpush1.msra.mxu0 0.0
        %1086 = vmatprep.subr.mxu0 0.0
        %1087 = vmatpush1.msra.mxu0 0.0
        %1088 = vmatprep.subr.mxu0 0.0
        %1089 = vmatpush1.msra.mxu0 0.0
        %1090 = vmatprep.subr.mxu0 0.0
        %1091 = vmatpush1.msra.mxu0 0.0
        %1092 = vmatprep.subr.mxu0 0.0
        %1093 = vmatpush1.msra.mxu0 0.0
        %1094 = vmatprep.subr.mxu0 0.0
        %1095 = vmatpush1.msra.mxu0 0.0
        %1096 = vmatprep.subr.mxu0 0.0
        %1097 = vmatpush1.msra.mxu0 0.0
        %1098 = vmatprep.subr.mxu0 0.0
        %1099 = vmatpush1.msra.mxu0 0.0
        %1100 = vmatprep.subr.mxu0 0.0
        %1101 = vmatpush1.msra.mxu0 0.0
        %1102 = vmatprep.subr.mxu0 0.0
        %1103 = vmatpush1.msra.mxu0 0.0
        %1104 = vmatprep.subr.mxu0 0.0
        %1105 = vmatpush1.msra.mxu0 0.0
        %1106 = vmatprep.subr.mxu0 0.0
        %1107 = vmatpush1.msra.mxu0 0.0
        %1108 = vmatprep.mubr.f32.mxu0 0.0
        %1109 = vmatmul.mubr.f32.gmra.mrb[0].mxu0 %v923
        %v1110 = vpop.f32.mrb[0].mxu0
        %v1111 = vadd.f32 0.0, %v1110
        %v1112 = vpop.f32.mrb[0].mxu0
        %1113 = vdwg.mxu0
        %v1114 = vrot.slane %v1007, 7
        %v1115 = vsel %vm319, %v1114, 0.0
        %v1116 = vrot.slane %v1111, 1
        %v1117 = vsel %vm320, %v1116, 0.0
        %1118 = vmatprep.subr.mxu0 0.0
        %1119 = vmatpush1.msra.mxu0 %v1011
        %1120 = vmatprep.subr.mxu0 0.0
        %1121 = vmatpush1.msra.mxu0 %v1012
        %1122 = vmatprep.subr.mxu0 0.0
        %1123 = vmatpush1.msra.mxu0 %v1013
        %1124 = vmatprep.subr.mxu0 0.0
        %1125 = vmatpush1.msra.mxu0 %v1014
        %1126 = vmatprep.subr.mxu0 0.0
        %1127 = vmatpush1.msra.mxu0 %v1015
        %1128 = vmatprep.subr.mxu0 0.0
        %1129 = vmatpush1.msra.mxu0 %v1016
        %1130 = vmatprep.subr.mxu0 0.0
        %1131 = vmatpush1.msra.mxu0 %v1017
        %1132 = vmatprep.subr.mxu0 0.0
        %1133 = vmatpush1.msra.mxu0 %v1018
        %1134 = vmatprep.subr.mxu0 0.0
        %1135 = vmatpush1.msra.mxu0 %v1019
        %1136 = vmatprep.subr.mxu0 0.0
        %1137 = vmatpush1.msra.mxu0 %v1020
        %1138 = vmatprep.subr.mxu0 0.0
        %1139 = vmatpush1.msra.mxu0 %v1021
        %1140 = vmatprep.subr.mxu0 0.0
        %1141 = vmatpush1.msra.mxu0 %v1022
        %1142 = vmatprep.subr.mxu0 0.0
        %1143 = vmatpush1.msra.mxu0 %v1023
        %1144 = vmatprep.subr.mxu0 0.0
        %1145 = vmatpush1.msra.mxu0 %v1024
        %1146 = vmatprep.subr.mxu0 0.0
        %1147 = vmatpush1.msra.mxu0 %v1025
        %1148 = vmatprep.subr.mxu0 0.0
        %1149 = vmatpush1.msra.mxu0 %v1026
        %1150 = vmatprep.subr.mxu0 0.0
        %1151 = vmatpush1.msra.mxu0 0.0
        %1152 = vmatprep.subr.mxu0 0.0
        %1153 = vmatpush1.msra.mxu0 0.0
        %1154 = vmatprep.subr.mxu0 0.0
        %1155 = vmatpush1.msra.mxu0 0.0
        %1156 = vmatprep.subr.mxu0 0.0
        %1157 = vmatpush1.msra.mxu0 0.0
        %1158 = vmatprep.subr.mxu0 0.0
        %1159 = vmatpush1.msra.mxu0 0.0
        %1160 = vmatprep.subr.mxu0 0.0
        %1161 = vmatpush1.msra.mxu0 0.0
        %1162 = vmatprep.subr.mxu0 0.0
        %1163 = vmatpush1.msra.mxu0 0.0
        %1164 = vmatprep.subr.mxu0 0.0
        %1165 = vmatpush1.msra.mxu0 0.0
        %1166 = vmatprep.subr.mxu0 0.0
        %1167 = vmatpush1.msra.mxu0 0.0
        %1168 = vmatprep.subr.mxu0 0.0
        %1169 = vmatpush1.msra.mxu0 0.0
        %1170 = vmatprep.subr.mxu0 0.0
        %1171 = vmatpush1.msra.mxu0 0.0
        %1172 = vmatprep.subr.mxu0 0.0
        %1173 = vmatpush1.msra.mxu0 0.0
        %1174 = vmatprep.subr.mxu0 0.0
        %1175 = vmatpush1.msra.mxu0 0.0
        %1176 = vmatprep.subr.mxu0 0.0
        %1177 = vmatpush1.msra.mxu0 0.0
        %1178 = vmatprep.subr.mxu0 0.0
        %1179 = vmatpush1.msra.mxu0 0.0
        %1180 = vmatprep.subr.mxu0 0.0
        %1181 = vmatpush1.msra.mxu0 0.0
        %1182 = vmatprep.mubr.f32.mxu0 0.0
        %1183 = vmatmul.mubr.f32.gmra.mrb[0].mxu0 %v923
        %v1184 = vpop.f32.mrb[0].mxu0
        %v1185 = vadd.f32 %v1115, %v1184
        %v1186 = vpop.f32.mrb[0].mxu0
        %1187 = vdwg.mxu0
        %v1188 = vadd.f32 %v1185, %v1117
        %v1189 = vrot.slane %v1188, 4
        %v1190 = vadd.f32 %v1188, %v1189
        %v1191 = vrot.slane %v1190, 2
        %v1192 = vadd.f32 %v1190, %v1191
        %v1193 = vrot.slane %v1192, 1
        %v1194 = vadd.f32 %v1192, %v1193
        %v1195 = vmul.f32 %v1188, %v1188
        %v1196 = vrot.slane %v1195, 4
        %v1197 = vadd.f32 %v1195, %v1196
        %v1198 = vrot.slane %v1197, 2
        %v1199 = vadd.f32 %v1197, %v1198
        %v1200 = vrot.slane %v1199, 1
        %v1201 = vadd.f32 %v1199, %v1200
        %1202 = vmatprep.subr.mxu0 0.0
        %1203 = vmatpush1.msra.mxu0 %v321
        %1204 = vmatprep.subr.mxu0 0.0
        %1205 = vmatpush1.msra.mxu0 %v322
        %1206 = vmatprep.subr.mxu0 0.0
        %1207 = vmatpush1.msra.mxu0 %v323
        %1208 = vmatprep.subr.mxu0 0.0
        %1209 = vmatpush1.msra.mxu0 %v324
        %1210 = vmatprep.subr.mxu0 0.0
        %1211 = vmatpush1.msra.mxu0 %v325
        %1212 = vmatprep.subr.mxu0 0.0
        %1213 = vmatpush1.msra.mxu0 %v326
        %1214 = vmatprep.subr.mxu0 0.0
        %1215 = vmatpush1.msra.mxu0 %v327
        %1216 = vmatprep.subr.mxu0 0.0
        %1217 = vmatpush1.msra.mxu0 %v328
        %1218 = vmatprep.subr.mxu0 0.0
        %1219 = vmatpush1.msra.mxu0 %v329
        %1220 = vmatprep.subr.mxu0 0.0
        %1221 = vmatpush1.msra.mxu0 %v330
        %1222 = vmatprep.subr.mxu0 0.0
        %1223 = vmatpush1.msra.mxu0 %v331
        %1224 = vmatprep.subr.mxu0 0.0
        %1225 = vmatpush1.msra.mxu0 %v332
        %1226 = vmatprep.subr.mxu0 0.0
        %1227 = vmatpush1.msra.mxu0 %v333
        %1228 = vmatprep.subr.mxu0 0.0
        %1229 = vmatpush1.msra.mxu0 %v334
        %1230 = vmatprep.subr.mxu0 0.0
        %1231 = vmatpush1.msra.mxu0 %v335
        %1232 = vmatprep.subr.mxu0 0.0
        %1233 = vmatpush1.msra.mxu0 %v336
        %1234 = vmatprep.subr.mxu0 0.0
        %1235 = vmatpush1.msra.mxu0 0.0
        %1236 = vmatprep.subr.mxu0 0.0
        %1237 = vmatpush1.msra.mxu0 0.0
        %1238 = vmatprep.subr.mxu0 0.0
        %1239 = vmatpush1.msra.mxu0 0.0
        %1240 = vmatprep.subr.mxu0 0.0
        %1241 = vmatpush1.msra.mxu0 0.0
        %1242 = vmatprep.subr.mxu0 0.0
        %1243 = vmatpush1.msra.mxu0 0.0
        %1244 = vmatprep.subr.mxu0 0.0
        %1245 = vmatpush1.msra.mxu0 0.0
        %1246 = vmatprep.subr.mxu0 0.0
        %1247 = vmatpush1.msra.mxu0 0.0
        %1248 = vmatprep.subr.mxu0 0.0
        %1249 = vmatpush1.msra.mxu0 0.0
        %1250 = vmatprep.subr.mxu0 0.0
        %1251 = vmatpush1.msra.mxu0 0.0
        %1252 = vmatprep.subr.mxu0 0.0
        %1253 = vmatpush1.msra.mxu0 0.0
        %1254 = vmatprep.subr.mxu0 0.0
        %1255 = vmatpush1.msra.mxu0 0.0
        %1256 = vmatprep.subr.mxu0 0.0
        %1257 = vmatpush1.msra.mxu0 0.0
        %1258 = vmatprep.subr.mxu0 0.0
        %1259 = vmatpush1.msra.mxu0 0.0
        %1260 = vmatprep.subr.mxu0 0.0
        %1261 = vmatpush1.msra.mxu0 0.0
        %1262 = vmatprep.subr.mxu0 0.0
        %1263 = vmatpush1.msra.mxu0 0.0
        %1264 = vmatprep.subr.mxu0 0.0
        %1265 = vmatpush1.msra.mxu0 0.0
        %1266 = vmatprep.mubr.f32.mxu0 0.0
        %1267 = vmatmul.mubr.f32.gmra.mrb[0].mxu0 %v1194
        %v1268 = vpop.f32.mrb[0].mxu0
        %v1269 = vadd.f32 0.0, %v1268
        %v1270 = vpop.f32.mrb[0].mxu0
        %1271 = vdwg.mxu0
        %1272 = vmatprep.subr.mxu0 0.0
        %1273 = vmatpush1.msra.mxu0 %v321
        %1274 = vmatprep.subr.mxu0 0.0
        %1275 = vmatpush1.msra.mxu0 %v322
        %1276 = vmatprep.subr.mxu0 0.0
        %1277 = vmatpush1.msra.mxu0 %v323
        %1278 = vmatprep.subr.mxu0 0.0
        %1279 = vmatpush1.msra.mxu0 %v324
        %1280 = vmatprep.subr.mxu0 0.0
        %1281 = vmatpush1.msra.mxu0 %v325
        %1282 = vmatprep.subr.mxu0 0.0
        %1283 = vmatpush1.msra.mxu0 %v326
        %1284 = vmatprep.subr.mxu0 0.0
        %1285 = vmatpush1.msra.mxu0 %v327
        %1286 = vmatprep.subr.mxu0 0.0
        %1287 = vmatpush1.msra.mxu0 %v328
        %1288 = vmatprep.subr.mxu0 0.0
        %1289 = vmatpush1.msra.mxu0 %v329
        %1290 = vmatprep.subr.mxu0 0.0
        %1291 = vmatpush1.msra.mxu0 %v330
        %1292 = vmatprep.subr.mxu0 0.0
        %1293 = vmatpush1.msra.mxu0 %v331
        %1294 = vmatprep.subr.mxu0 0.0
        %1295 = vmatpush1.msra.mxu0 %v332
        %1296 = vmatprep.subr.mxu0 0.0
        %1297 = vmatpush1.msra.mxu0 %v333
        %1298 = vmatprep.subr.mxu0 0.0
        %1299 = vmatpush1.msra.mxu0 %v334
        %1300 = vmatprep.subr.mxu0 0.0
        %1301 = vmatpush1.msra.mxu0 %v335
        %1302 = vmatprep.subr.mxu0 0.0
        %1303 = vmatpush1.msra.mxu0 %v336
        %1304 = vmatprep.subr.mxu0 0.0
        %1305 = vmatpush1.msra.mxu0 0.0
        %1306 = vmatprep.subr.mxu0 0.0
        %1307 = vmatpush1.msra.mxu0 0.0
        %1308 = vmatprep.subr.mxu0 0.0
        %1309 = vmatpush1.msra.mxu0 0.0
        %1310 = vmatprep.subr.mxu0 0.0
        %1311 = vmatpush1.msra.mxu0 0.0
        %1312 = vmatprep.subr.mxu0 0.0
        %1313 = vmatpush1.msra.mxu0 0.0
        %1314 = vmatprep.subr.mxu0 0.0
        %1315 = vmatpush1.msra.mxu0 0.0
        %1316 = vmatprep.subr.mxu0 0.0
        %1317 = vmatpush1.msra.mxu0 0.0
        %1318 = vmatprep.subr.mxu0 0.0
        %1319 = vmatpush1.msra.mxu0 0.0
        %1320 = vmatprep.subr.mxu0 0.0
        %1321 = vmatpush1.msra.mxu0 0.0
        %1322 = vmatprep.subr.mxu0 0.0
        %1323 = vmatpush1.msra.mxu0 0.0
        %1324 = vmatprep.subr.mxu0 0.0
        %1325 = vmatpush1.msra.mxu0 0.0
        %1326 = vmatprep.subr.mxu0 0.0
        %1327 = vmatpush1.msra.mxu0 0.0
        %1328 = vmatprep.subr.mxu0 0.0
        %1329 = vmatpush1.msra.mxu0 0.0
        %1330 = vmatprep.subr.mxu0 0.0
        %1331 = vmatpush1.msra.mxu0 0.0
        %1332 = vmatprep.subr.mxu0 0.0
        %1333 = vmatpush1.msra.mxu0 0.0
        %1334 = vmatprep.subr.mxu0 0.0
        %1335 = vmatpush1.msra.mxu0 0.0
        %1336 = vmatprep.mubr.f32.mxu0 0.0
        %1337 = vmatmul.mubr.f32.gmra.mrb[0].mxu0 %v1201
        %v1338 = vpop.f32.mrb[0].mxu0
        %v1339 = vadd.f32 0.0, %v1338
        %v1340 = vpop.f32.mrb[0].mxu0
        %1341 = vdwg.mxu0
        %v1342 = vmul.f32 %v1269, %v1269
        %v1343 = vsub.f32 %v1339, %v1342
        %v1344 = vmax.f32 %v1343, 0.0
        %v1345 = vadd.f32 %v1344, 1e-05
        %v1346 = vrsqrt.pop %v1345
        %v1347 = vmul.f32 %v1269, %v1346
        %v1349 = vsel %vm762, %v1346, 0
        %1351 = vmatprep.subr.mxu0 0.0
        %1352 = vmatpush1.msra.mxu0 %v768
        %1353 = vmatprep.subr.mxu0 0.0
        %1354 = vmatpush1.msra.mxu0 0.0
        %1355 = vmatprep.subr.mxu0 0.0
        %1356 = vmatpush1.msra.mxu0 0.0
        %1357 = vmatprep.subr.mxu0 0.0
        %1358 = vmatpush1.msra.mxu0 0.0
        %1359 = vmatprep.subr.mxu0 0.0
        %1360 = vmatpush1.msra.mxu0 0.0
        %1361 = vmatprep.subr.mxu0 0.0
        %1362 = vmatpush1.msra.mxu0 0.0
        %1363 = vmatprep.subr.mxu0 0.0
        %1364 = vmatpush1.msra.mxu0 0.0
        %1365 = vmatprep.subr.mxu0 0.0
        %1366 = vmatpush1.msra.mxu0 0.0
        %1367 = vmatprep.subr.mxu0 0.0
        %1368 = vmatpush1.msra.mxu0 0.0
        %1369 = vmatprep.subr.mxu0 0.0
        %1370 = vmatpush1.msra.mxu0 0.0
        %1371 = vmatprep.subr.mxu0 0.0
        %1372 = vmatpush1.msra.mxu0 0.0
        %1373 = vmatprep.subr.mxu0 0.0
        %1374 = vmatpush1.msra.mxu0 0.0
        %1375 = vmatprep.subr.mxu0 0.0
        %1376 = vmatpush1.msra.mxu0 0.0
        %1377 = vmatprep.subr.mxu0 0.0
        %1378 = vmatpush1.msra.mxu0 0.0
        %1379 = vmatprep.subr.mxu0 0.0
        %1380 = vmatpush1.msra.mxu0 0.0
        %1381 = vmatprep.subr.mxu0 0.0
        %1382 = vmatpush1.msra.mxu0 0.0
        %1383 = vmatprep.subr.mxu0 0.0
        %1384 = vmatpush1.msra.mxu0 0.0
        %1385 = vmatprep.subr.mxu0 0.0
        %1386 = vmatpush1.msra.mxu0 0.0
        %1387 = vmatprep.subr.mxu0 0.0
        %1388 = vmatpush1.msra.mxu0 0.0
        %1389 = vmatprep.subr.mxu0 0.0
        %1390 = vmatpush1.msra.mxu0 0.0
        %1391 = vmatprep.subr.mxu0 0.0
        %1392 = vmatpush1.msra.mxu0 0.0
        %1393 = vmatprep.subr.mxu0 0.0
        %1394 = vmatpush1.msra.mxu0 0.0
        %1395 = vmatprep.subr.mxu0 0.0
        %1396 = vmatpush1.msra.mxu0 0.0
        %1397 = vmatprep.subr.mxu0 0.0
        %1398 = vmatpush1.msra.mxu0 0.0
        %1399 = vmatprep.subr.mxu0 0.0
        %1400 = vmatpush1.msra.mxu0 0.0
        %1401 = vmatprep.subr.mxu0 0.0
        %1402 = vmatpush1.msra.mxu0 0.0
        %1403 = vmatprep.subr.mxu0 0.0
        %1404 = vmatpush1.msra.mxu0 0.0
        %1405 = vmatprep.subr.mxu0 0.0
        %1406 = vmatpush1.msra.mxu0 0.0
        %1407 = vmatprep.subr.mxu0 0.0
        %1408 = vmatpush1.msra.mxu0 0.0
        %1409 = vmatprep.subr.mxu0 0.0
        %1410 = vmatpush1.msra.mxu0 0.0
        %1411 = vmatprep.subr.mxu0 0.0
        %1412 = vmatpush1.msra.mxu0 0.0
        %1413 = vmatprep.subr.mxu0 0.0
        %1414 = vmatpush1.msra.mxu0 0.0
        %1415 = vmatprep.mubr.f32.mxu0 0.0
        %1416 = vmatmul.mubr.f32.gmra.mrb[0].mxu0 %v1349
        %v1417 = vpop.f32.mrb[0].mxu0
        %v1418 = vadd.f32 0.0, %v1417
        %v1419 = vpop.f32.mrb[0].mxu0
        %1420 = vdwg.mxu0
        %v1422 = vsel %vm762, %v1347, 0
        %1424 = vmatprep.subr.mxu0 0.0
        %1425 = vmatpush1.msra.mxu0 %v768
        %1426 = vmatprep.subr.mxu0 0.0
        %1427 = vmatpush1.msra.mxu0 0.0
        %1428 = vmatprep.subr.mxu0 0.0
        %1429 = vmatpush1.msra.mxu0 0.0
        %1430 = vmatprep.subr.mxu0 0.0
        %1431 = vmatpush1.msra.mxu0 0.0
        %1432 = vmatprep.subr.mxu0 0.0
        %1433 = vmatpush1.msra.mxu0 0.0
        %1434 = vmatprep.subr.mxu0 0.0
        %1435 = vmatpush1.msra.mxu0 0.0
        %1436 = vmatprep.subr.mxu0 0.0
        %1437 = vmatpush1.msra.mxu0 0.0
        %1438 = vmatprep.subr.mxu0 0.0
        %1439 = vmatpush1.msra.mxu0 0.0
        %1440 = vmatprep.subr.mxu0 0.0
        %1441 = vmatpush1.msra.mxu0 0.0
        %1442 = vmatprep.subr.mxu0 0.0
        %1443 = vmatpush1.msra.mxu0 0.0
        %1444 = vmatprep.subr.mxu0 0.0
        %1445 = vmatpush1.msra.mxu0 0.0
        %1446 = vmatprep.subr.mxu0 0.0
        %1447 = vmatpush1.msra.mxu0 0.0
        %1448 = vmatprep.subr.mxu0 0.0
        %1449 = vmatpush1.msra.mxu0 0.0
        %1450 = vmatprep.subr.mxu0 0.0
        %1451 = vmatpush1.msra.mxu0 0.0
        %1452 = vmatprep.subr.mxu0 0.0
        %1453 = vmatpush1.msra.mxu0 0.0
        %1454 = vmatprep.subr.mxu0 0.0
        %1455 = vmatpush1.msra.mxu0 0.0
        %1456 = vmatprep.subr.mxu0 0.0
        %1457 = vmatpush1.msra.mxu0 0.0
        %1458 = vmatprep.subr.mxu0 0.0
        %1459 = vmatpush1.msra.mxu0 0.0
        %1460 = vmatprep.subr.mxu0 0.0
        %1461 = vmatpush1.msra.mxu0 0.0
        %1462 = vmatprep.subr.mxu0 0.0
        %1463 = vmatpush1.msra.mxu0 0.0
        %1464 = vmatprep.subr.mxu0 0.0
        %1465 = vmatpush1.msra.mxu0 0.0
        %1466 = vmatprep.subr.mxu0 0.0
        %1467 = vmatpush1.msra.mxu0 0.0
        %1468 = vmatprep.subr.mxu0 0.0
        %1469 = vmatpush1.msra.mxu0 0.0
        %1470 = vmatprep.subr.mxu0 0.0
        %1471 = vmatpush1.msra.mxu0 0.0
        %1472 = vmatprep.subr.mxu0 0.0
        %1473 = vmatpush1.msra.mxu0 0.0
        %1474 = vmatprep.subr.mxu0 0.0
        %1475 = vmatpush1.msra.mxu0 0.0
        %1476 = vmatprep.subr.mxu0 0.0
        %1477 = vmatpush1.msra.mxu0 0.0
        %1478 = vmatprep.subr.mxu0 0.0
        %1479 = vmatpush1.msra.mxu0 0.0
        %1480 = vmatprep.subr.mxu0 0.0
        %1481 = vmatpush1.msra.mxu0 0.0
        %1482 = vmatprep.subr.mxu0 0.0
        %1483 = vmatpush1.msra.mxu0 0.0
        %1484 = vmatprep.subr.mxu0 0.0
        %1485 = vmatpush1.msra.mxu0 0.0
        %1486 = vmatprep.subr.mxu0 0.0
        %1487 = vmatpush1.msra.mxu0 0.0
        %1488 = vmatprep.mubr.f32.mxu0 0.0
        %1489 = vmatmul.mubr.f32.gmra.mrb[0].mxu0 %v1422
        %v1490 = vpop.f32.mrb[0].mxu0
        %v1491 = vadd.f32 0.0, %v1490
        %v1492 = vpop.f32.mrb[0].mxu0
        %1493 = vdwg.mxu0
        %v1494 = vlaneseq
        %v1495 = vshrl.u32 %v1494, 7
        %v1496 = vsub.s32 0, %v1495
        %v1497 = vrot.slane %v1418, %v1496
        %v1498 = vmul.f32 %v1188, %v1497
        %v1499 = vlaneseq
        %v1500 = vshrl.u32 %v1499, 7
        %v1501 = vsub.s32 0, %v1500
        %v1502 = vrot.slane %v1491, %v1501
        %v1503 = vsub.f32 %v1498, %v1502
        %v1504 = vadd.f32 %v1503, %v304
        %v1505 = vmax.f32 %v1504, 0.0
        %1506 = vst [vmem:[%s299] sm:$0xff] %v1505
        %s1507 = sand.u32 %s183, 1
        %s1508 = scalar_lea.sflag [#allocation4], %s1507
        %s1509 = sand.u32 %s183, 1
        %s1510 = smul.addr %s1509, 8
        %s1511 = scalar_lea.vmem [#allocation7], %s1510
        // Predicated region
        $region57: #{tpu_custom_call.1} parent=47 // pred_check
          %p1512 = pneg %p193
        $region58: #{tpu_custom_call.1} parent=47 // pred_check_branch
          %1514 = sbr.rel (%p1512) target = $region60
        $region59: #{tpu_custom_call.1} parent=47 // pred_region
          %s1516 = ssub.s32 128, 128
          %1517 = vsyncadd %s1508, %s1516
          %s1518 = smul.addr %s23, 128
          %s1519 = scalar_lea.hbm %s7, %s1518
          %s1521 = sshll.u32 %s1511, 4
          %s1522 = int_to_ptr.vmem [resolvable:$true] %s1521
          %1524 = dma.vmem_to_hbm [thread:$0]  %s1522, 128, %s1519, %s1508
        $region60: #{tpu_custom_call.1} parent=47 // pred_fallthru
          _
      $region48: #{tpu_custom_call.1} parent=5 // pred_fallthru
        _
      %p1525 = scmp.le.s32.totalorder 2, %s18
      // Predicated region
      $region61: #{tpu_custom_call.1} parent=5 // pred_check
        %p1526 = pneg %p1525
      $region62: #{tpu_custom_call.1} parent=5 // pred_check_branch
        %1528 = sbr.rel (%p1526) target = $region64
      $region63: #{tpu_custom_call.1} parent=5 // pred_region
        %s1529 = ssub.s32 %s18, 2
        // Predicated region
        $region65: #{tpu_custom_call.1} parent=63 // pred_check
          %p1530 = pneg %p199
        $region66: #{tpu_custom_call.1} parent=63 // pred_check_branch
          %1532 = sbr.rel (%p1530) target = $region68
        $region67: #{tpu_custom_call.1} parent=63 // pred_region
          %s1533 = sand.u32 %s184, 1
          %s1534 = scalar_lea.sflag [#allocation4], %s1533
          %s1535 = sand.u32 %s184, 1
          %s1536 = smul.addr %s1535, 8
          %s1537 = scalar_lea.vmem [#allocation7], %s1536
          %1538 = dma.done %s1534, 128
        $region68: #{tpu_custom_call.1} parent=63 // pred_fallthru
          _
      $region64: #{tpu_custom_call.1} parent=5 // pred_fallthru
        _
    $region6: #{tpu_custom_call.1} parent=1 // loop_footer
      %s22 = sadd.s32 1, %s18
    $region7: #{tpu_custom_call.1} parent=1 // loop_footer_branch
      %17 = sbr.rel target = $region3
    $region8: #{tpu_custom_call.1} parent=1 // loop_exit
      _
    %1539 = vsyncpa [#allocation3], 1
    %s1540 = scalar_lea.sflag [#allocation3], 1
    %1541 = vsyncpa %s1540, 1
    %1542 = vsyncpa [#allocation6], 1
    %1543 = vsyncpa [#allocation4], 1
    %s1544 = scalar_lea.sflag [#allocation4], 1
    %1545 = vsyncpa %s1544, 1

</llo_original>
